<compile_context>
chip_gen: v6e
topology: v6e:2x2x1
jax: 0.10.0
libtpu: 0.0.40
codegen_flags: <defaults>
</compile_context>

<pallas_src>
import math
import numpy as np
import jax
import jax.numpy as jnp
from jax.experimental import pallas as pl
from jax.experimental.pallas import tpu as pltpu

# ---- small stand-in shapes consistent with the module's forward ----
B = 2            # batch (BATCH=5 in original)
T = 8            # video time (16 in original)
H = W = 16       # spatial (224 in original)
S = H * W        # flattened spatial = 256  (lane-dense: multiple of 128)
TF = 4           # backbone-feature time length (stand-in)
F_RGB = 32       # stand-in I3D rgb feature width
F_FLOW = 32      # stand-in I3D flow feature width
POOL = 9         # avgpool_kernel_size
PAD = POOL // 2
NDIR = 12
FCL_PAD = 128    # lane-padded FCL output width (real width = NDIR)

# self.directions = xy(angles * pi): compile-time constants baked into matrices
_angles = np.array([0., 1/6, 2/6, 3/6, 4/6, 5/6, 1., 7/6, 8/6, 9/6, 10/6, 11/6],
                   dtype=np.float64) * math.pi
DIRECTIONS = np.stack([np.cos(_angles), np.sin(_angles)], axis=-1).astype(np.float32)  # [12, 2]


def _band(n):
    # banded 0/1 matrix: 1 where |i-j| <= PAD.  Encodes both the 9-wide window
    # and the zero-padding clipping at the edges (count_include_pad=True).
    idx = np.arange(n)
    return (np.abs(idx[:, None] - idx[None, :]) <= PAD).astype(np.float32)


# Pool over T (per flow channel), 1/81 folded in:      yt = A2T @ f
A2T = np.kron(np.eye(2, dtype=np.float32), _band(T)) / float(POOL * POOL)      # [2T, 2T]
# Pool over H with W untouched (s = h*W + w):          pooled = yt @ PH
PH = np.kron(_band(H), np.eye(W, dtype=np.float32))                            # [S, S]
# Direction projection (2 -> 12, batched over t):      proj = PDIR @ pooled
PDIR = np.kron(DIRECTIONS, np.eye(T, dtype=np.float32))                        # [12T, 2T]
# Helpers to build the per-frame switch matrix W_sw[t, z*T+t'] = sw[t,z]*(t==t')
E_REP = np.kron(np.eye(NDIR, dtype=np.float32), np.ones((1, T), np.float32))   # [12, 12T]
M_DIAG = np.tile(np.eye(T, dtype=np.float32), (1, NDIR))                       # [T, 12T]


# --------------- FCL: cat -> Linear(1024) -> ReLU -> Linear(256) -> ReLU -> Linear(12) -> sigmoid
def _fcl_kernel(x_ref, w1_ref, b1_ref, w2_ref, b2_ref, w3_ref, b3_ref, o_ref):
    x = x_ref[...]
    h = jnp.dot(x, w1_ref[...], preferred_element_type=jnp.float32) + b1_ref[...]
    h = jnp.maximum(h, 0.0)          # ReLU; Dropout(0.6) is identity at inference
    h = jnp.dot(h, w2_ref[...], preferred_element_type=jnp.float32) + b2_ref[...]
    h = jnp.maximum(h, 0.0)
    h = jnp.dot(h, w3_ref[...], preferred_element_type=jnp.float32) + b3_ref[...]
    o_ref[...] = jax.nn.sigmoid(h)


def fcl_forward(x, params):
    # x: [N, F_RGB + F_FLOW] -> [N, 12].  Final layer is zero-padded to 128 lanes
    # so the output store is a full (unmasked) vst; sliced back to 12 here.
    w1, b1, w2, b2, w3, b3 = params
    w3p = jnp.pad(w3, ((0, 0), (0, FCL_PAD - w3.shape[1])))
    b3p = jnp.pad(b3, ((0, 0), (0, FCL_PAD - b3.shape[1])))
    out = pl.pallas_call(
        _fcl_kernel,
        out_shape=jax.ShapeDtypeStruct((x.shape[0], FCL_PAD), jnp.float32),
    )(x, w1, b1, w2, b2, w3p, b3p)
    return out[:, :w3.shape[1]]


# --------------- fused kernel: avg-pool + directions + switch combine + threshold + both maskings
def _fused_mask_kernel(a2t_ref, ph_ref, pdir_ref, erep_ref, mdiag_ref,
                       flows_ref, switch_ref, rgbs_ref, bg_ref,
                       mask_ref, m0_ref, m1_ref):
    f = flows_ref[0]                                                     # [2T, S] (c-major rows)

    # 9x9 average pool over (T, H), stride 1, pad 4, count_include_pad=True:
    # two banded matmuls on the MXU (1/81 folded into A2T, padding via band clipping).
    yt = jnp.dot(a2t_ref[...], f, preferred_element_type=jnp.float32)        # [2T, S]
    pooled = jnp.dot(yt, ph_ref[...], preferred_element_type=jnp.float32)    # [2T, S]

    # einsum('bcthw,zc->bthwz') + clamp(min=0) as one MXU matmul + relu.
    proj = jnp.dot(pdir_ref[...], pooled, preferred_element_type=jnp.float32)  # [12T, S]
    proj = jnp.maximum(proj, 0.0)

    # einsum('bthwz,btz->bthw'): build W_sw[t, z*T+t'] = sw[t,z]*(t==t') and do
    # the z-reduction as a single matmul (no per-z broadcast loop on the VPU).
    sw = switch_ref[0]                                                   # [T, 12]
    w_sw = jnp.dot(sw, erep_ref[...], preferred_element_type=jnp.float32) * mdiag_ref[...]  # [T, 12T]
    m = jnp.dot(w_sw, proj, preferred_element_type=jnp.float32)          # [T, S]

    # threshold
    m = jnp.where(m < 0.5, 0.0, 1.0)
    mask_ref[0] = m

    # both maskings from the already-loaded tiles:
    #   masked0 = rgbs*m + bg*(1-m) = bg + m*(rgbs-bg)
    #   masked1 = rgbs*(1-m) + bg*m = rgbs - m*(rgbs-bg)
    r = rgbs_ref[0]                                                      # [3, T, S]
    bgb = jnp.broadcast_to(bg_ref[...][:, None, :], (3, T, S))           # hoisted once
    mb = jnp.broadcast_to(m[None], (3, T, S))                            # hoisted once
    md = mb * (r - bgb)
    m0_ref[0] = bgb + md
    m1_ref[0] = r - md


def fused_mask_and_masking(flows, switch, rgbs, img_background):
    bsz = flows.shape[0]
    # free HBM reshapes to a lane-dense layout (last dim S = 256)
    flows_f = flows.reshape(bsz, 2 * T, S)
    rgbs_f = rgbs.reshape(bsz, 3, T, S)
    bg_f = img_background.reshape(3, S)

    a2t = jnp.asarray(A2T)
    ph = jnp.asarray(PH)
    pdir = jnp.asarray(PDIR)
    erep = jnp.asarray(E_REP)
    mdiag = jnp.asarray(M_DIAG)

    mask_f, m0_f, m1_f = pl.pallas_call(
        _fused_mask_kernel,
        grid=(bsz,),
        in_specs=[
            pl.BlockSpec((2 * T, 2 * T), lambda b: (0, 0)),
            pl.BlockSpec((S, S), lambda b: (0, 0)),
            pl.BlockSpec((NDIR * T, 2 * T), lambda b: (0, 0)),
            pl.BlockSpec((NDIR, NDIR * T), lambda b: (0, 0)),
            pl.BlockSpec((T, NDIR * T), lambda b: (0, 0)),
            pl.BlockSpec((1, 2 * T, S), lambda b: (b, 0, 0)),
            pl.BlockSpec((1, T, NDIR), lambda b: (b, 0, 0)),
            pl.BlockSpec((1, 3, T, S), lambda b: (b, 0, 0, 0)),
            pl.BlockSpec((3, S), lambda b: (0, 0)),
        ],
        out_specs=[
            pl.BlockSpec((1, T, S), lambda b: (b, 0, 0)),
            pl.BlockSpec((1, 3, T, S), lambda b: (b, 0, 0, 0)),
            pl.BlockSpec((1, 3, T, S), lambda b: (b, 0, 0, 0)),
        ],
        out_shape=(
            jax.ShapeDtypeStruct((bsz, T, S), jnp.float32),
            jax.ShapeDtypeStruct((bsz, 3, T, S), jnp.float32),
            jax.ShapeDtypeStruct((bsz, 3, T, S), jnp.float32),
        ),
        compiler_params=pltpu.CompilerParams(
            dimension_semantics=("parallel",),
            vmem_limit_bytes=32 * 1024 * 1024,
        ),
    )(a2t, ph, pdir, erep, mdiag, flows_f, switch, rgbs_f, bg_f)

    return (mask_f.reshape(bsz, T, H, W),
            m0_f.reshape(bsz, 3, T, H, W),
            m1_f.reshape(bsz, 3, T, H, W))


# --------------- glue: F.interpolate(mode='linear', align_corners=False) over the last axis
def interp_linear_time(x, out_len):
    L = x.shape[-1]
    scale = L / out_len
    dst = jnp.arange(out_len, dtype=jnp.float32)
    src = jnp.maximum((dst + 0.5) * scale - 0.5, 0.0)
    i0 = jnp.minimum(jnp.floor(src).astype(jnp.int32), L - 1)
    i1 = jnp.minimum(i0 + 1, L - 1)
    w = src - i0.astype(jnp.float32)
    return x[..., i0] * (1.0 - w) + x[..., i1] * w


# --------------- MyModel.forward
def my_model_forward(params, rgbs, flows, img_background, feat_rgb, feat_flow):
    # TODO(synk): InceptionI3d backbones (rgb/flow/feature, checkpoint-loaded) have no
    # in-script equivalent; feat_rgb/feat_flow stand in for forward_twostream() outputs
    # and the final feature_backbone(masked*) calls are omitted.
    bsz, tf = feat_rgb.shape[0], feat_rgb.shape[1]

    # FCL over concatenated per-sample features (Pallas MXU kernel, lane-padded output)
    x = jnp.concatenate([feat_rgb, feat_flow], axis=-1).reshape(bsz * tf, -1)
    fcl_out = fcl_forward(x, params)                                     # [B*Tf, 12]
    switch_raw = fcl_out.reshape(bsz, tf, NDIR)
    # interpolate switch along time to the video length (PyTorch hard-codes 16 = its T)
    switch = jnp.transpose(
        interp_linear_time(jnp.transpose(switch_raw, (0, 2, 1)), T), (0, 2, 1))  # [B, T, 12]

    # one fused Pallas kernel: avg-pool + direction/switch einsums + threshold + both maskings
    mask, masked0, masked1 = fused_mask_and_masking(flows, switch, rgbs, img_background)

    # videos_background = img_bg repeated as a video: correct [B, 3, T, H, W] shape,
    # returned as a lazy broadcast (consumers should broadcast rather than materialize).
    videos_background = jnp.broadcast_to(
        img_background[None, :, None], (bsz, 3, T, H, W))

    return masked0, masked1, videos_background, mask, switch


if __name__ == "__main__":
    key = jax.random.PRNGKey(0)
    ks = jax.random.split(key, 12)
    rgbs = jax.random.normal(ks[0], (B, 3, T, H, W), jnp.float32)
    flows = jax.random.normal(ks[1], (B, 2, T, H, W), jnp.float32)
    img_background = jax.random.normal(ks[2], (3, H, W), jnp.float32)    # single background image
    # deterministic stand-in backbone features (see TODO in my_model_forward)
    feat_rgb = jax.random.normal(ks[3], (B, TF, F_RGB), jnp.float32)
    feat_flow = jax.random.normal(ks[4], (B, TF, F_FLOW), jnp.float32)

    d_in = F_RGB + F_FLOW
    params = (
        0.05 * jax.random.normal(ks[5], (d_in, 1024), jnp.float32),
        0.05 * jax.random.normal(ks[6], (1, 1024), jnp.float32),
        0.05 * jax.random.normal(ks[7], (1024, 256), jnp.float32),
        0.05 * jax.random.normal(ks[8], (1, 256), jnp.float32),
        0.05 * jax.random.normal(ks[9], (256, 12), jnp.float32),
        0.05 * jax.random.normal(ks[10], (1, 12), jnp.float32),
    )

    outs = jax.jit(my_model_forward)(params, rgbs, flows, img_background, feat_rgb, feat_flow)
    jax.block_until_ready(outs)
    print("KERNEL_OK")
</pallas_src>

<mosaic_0001>
module attributes {stable_mosaic.version = 11 : i64} {
  func.func @_fcl_kernel(%arg0: memref<8x64xf32, #tpu.memory_space<vmem>>, %arg1: memref<64x1024xf32, #tpu.memory_space<vmem>>, %arg2: memref<1x1024xf32, #tpu.memory_space<vmem>>, %arg3: memref<1024x256xf32, #tpu.memory_space<vmem>>, %arg4: memref<1x256xf32, #tpu.memory_space<vmem>>, %arg5: memref<256x128xf32, #tpu.memory_space<vmem>>, %arg6: memref<1x128xf32, #tpu.memory_space<vmem>>, %arg7: memref<8x128xf32, #tpu.memory_space<vmem>>) attributes {dimension_semantics = [], scalar_prefetch = 0 : i64, scratch_operands = 0 : i64, tpu.core_type = #tpu.core_type<tc>} {
    %c0 = arith.constant 0 : index
    %c0_0 = arith.constant 0 : index
    %0 = vector.load %arg0[%c0, %c0_0] : memref<8x64xf32, #tpu.memory_space<vmem>>, vector<8x64xf32>
    %c0_1 = arith.constant 0 : index
    %c0_2 = arith.constant 0 : index
    %1 = vector.load %arg1[%c0_1, %c0_2] : memref<64x1024xf32, #tpu.memory_space<vmem>>, vector<64x1024xf32>
    %cst = arith.constant dense<0.000000e+00> : vector<8x1024xf32>
    %2 = tpu.matmul %0, %1, %cst {dimension_numbers = #tpu.dot_dimension_numbers<[1], [0], [0], [1], [0, 0, 1, 1], [], []>} : vector<8x64xf32>, vector<64x1024xf32>, vector<8x1024xf32> -> vector<8x1024xf32>
    %c0_3 = arith.constant 0 : index
    %c0_4 = arith.constant 0 : index
    %3 = vector.load %arg2[%c0_3, %c0_4] : memref<1x1024xf32, #tpu.memory_space<vmem>>, vector<1x1024xf32>
    %4 = vector.broadcast %3 : vector<1x1024xf32> to vector<8x1024xf32>
    %5 = arith.addf %2, %4 : vector<8x1024xf32>
    %cst_5 = arith.constant 0.000000e+00 : f32
    %6 = vector.broadcast %cst_5 : f32 to vector<8x1024xf32>
    %7 = arith.maximumf %5, %6 : vector<8x1024xf32>
    %c0_6 = arith.constant 0 : index
    %c0_7 = arith.constant 0 : index
    %8 = vector.load %arg3[%c0_6, %c0_7] : memref<1024x256xf32, #tpu.memory_space<vmem>>, vector<1024x256xf32>
    %cst_8 = arith.constant dense<0.000000e+00> : vector<8x256xf32>
    %9 = tpu.matmul %7, %8, %cst_8 {dimension_numbers = #tpu.dot_dimension_numbers<[1], [0], [0], [1], [0, 0, 1, 1], [], []>} : vector<8x1024xf32>, vector<1024x256xf32>, vector<8x256xf32> -> vector<8x256xf32>
    %c0_9 = arith.constant 0 : index
    %c0_10 = arith.constant 0 : index
    %10 = vector.load %arg4[%c0_9, %c0_10] : memref<1x256xf32, #tpu.memory_space<vmem>>, vector<1x256xf32>
    %11 = vector.broadcast %10 : vector<1x256xf32> to vector<8x256xf32>
    %12 = arith.addf %9, %11 : vector<8x256xf32>
    %cst_11 = arith.constant 0.000000e+00 : f32
    %13 = vector.broadcast %cst_11 : f32 to vector<8x256xf32>
    %14 = arith.maximumf %12, %13 : vector<8x256xf32>
    %c0_12 = arith.constant 0 : index
    %c0_13 = arith.constant 0 : index
    %15 = vector.load %arg5[%c0_12, %c0_13] : memref<256x128xf32, #tpu.memory_space<vmem>>, vector<256x128xf32>
    %cst_14 = arith.constant dense<0.000000e+00> : vector<8x128xf32>
    %16 = tpu.matmul %14, %15, %cst_14 {dimension_numbers = #tpu.dot_dimension_numbers<[1], [0], [0], [1], [0, 0, 1, 1], [], []>} : vector<8x256xf32>, vector<256x128xf32>, vector<8x128xf32> -> vector<8x128xf32>
    %c0_15 = arith.constant 0 : index
    %c0_16 = arith.constant 0 : index
    %17 = vector.load %arg6[%c0_15, %c0_16] : memref<1x128xf32, #tpu.memory_space<vmem>>, vector<1x128xf32>
    %18 = vector.broadcast %17 : vector<1x128xf32> to vector<8x128xf32>
    %19 = arith.addf %16, %18 : vector<8x128xf32>
    %20 = arith.negf %19 : vector<8x128xf32>
    %21 = math.exp %20 : vector<8x128xf32>
    %cst_17 = arith.constant 1.000000e+00 : f32
    %22 = vector.broadcast %cst_17 : f32 to vector<8x128xf32>
    %23 = arith.addf %22, %21 : vector<8x128xf32>
    %24 = arith.divf %22, %23 : vector<8x128xf32>
    %c0_18 = arith.constant 0 : index
    %c0_19 = arith.constant 0 : index
    %25 = vector.load %arg7[%c0_18, %c0_19] : memref<8x128xf32, #tpu.memory_space<vmem>>, vector<8x128xf32>
    tpu.vector_store %arg7[%c0_18, %c0_19], %24 {strides = array<i32>} : memref<8x128xf32, #tpu.memory_space<vmem>>, vector<8x128xf32>,
    return
  }
}

module attributes {stable_mosaic.version = 11 : i64} {
  func.func @_fused_mask_kernel(%arg0: i32, %arg1: memref<16x16xf32, #tpu.memory_space<vmem>>, %arg2: memref<256x256xf32, #tpu.memory_space<vmem>>, %arg3: memref<96x16xf32, #tpu.memory_space<vmem>>, %arg4: memref<12x96xf32, #tpu.memory_space<vmem>>, %arg5: memref<8x96xf32, #tpu.memory_space<vmem>>, %arg6: memref<1x16x256xf32, #tpu.memory_space<vmem>>, %arg7: memref<1x8x12xf32, #tpu.memory_space<vmem>>, %arg8: memref<1x3x8x256xf32, #tpu.memory_space<vmem>>, %arg9: memref<3x256xf32, #tpu.memory_space<vmem>>, %arg10: memref<1x8x256xf32, #tpu.memory_space<vmem>>, %arg11: memref<1x3x8x256xf32, #tpu.memory_space<vmem>>, %arg12: memref<1x3x8x256xf32, #tpu.memory_space<vmem>>) attributes {dimension_semantics = [#tpu.dimension_semantics<parallel>], iteration_bounds = array<i64: 2>, scalar_prefetch = 0 : i64, scratch_operands = 0 : i64, tpu.core_type = #tpu.core_type<tc>, window_params = [{pipeline_mode = #tpu.pipeline_mode<synchronous>, transform_indices = @transform_0, window_bounds = array<i64: 16, 16>}, {pipeline_mode = #tpu.pipeline_mode<synchronous>, transform_indices = @transform_1, window_bounds = array<i64: 256, 256>}, {pipeline_mode = #tpu.pipeline_mode<synchronous>, transform_indices = @transform_2, window_bounds = array<i64: 96, 16>}, {pipeline_mode = #tpu.pipeline_mode<synchronous>, transform_indices = @transform_3, window_bounds = array<i64: 12, 96>}, {pipeline_mode = #tpu.pipeline_mode<synchronous>, transform_indices = @transform_4, window_bounds = array<i64: 8, 96>}, {transform_indices = @transform_5, window_bounds = array<i64: 1, 16, 256>}, {transform_indices = @transform_6, window_bounds = array<i64: 1, 8, 12>}, {transform_indices = @transform_7, window_bounds = array<i64: 1, 3, 8, 256>}, {pipeline_mode = #tpu.pipeline_mode<synchronous>, transform_indices = @transform_8, window_bounds = array<i64: 3, 256>}, {transform_indices = @transform_9, window_bounds = array<i64: 1, 8, 256>}, {transform_indices = @transform_10, window_bounds = array<i64: 1, 3, 8, 256>}, {transform_indices = @transform_11, window_bounds = array<i64: 1, 3, 8, 256>}]} {
    %c0 = arith.constant 0 : index
    %c0_0 = arith.constant 0 : index
    %c0_1 = arith.constant 0 : index
    %0 = vector.load %arg6[%c0, %c0_0, %c0_1] : memref<1x16x256xf32, #tpu.memory_space<vmem>>, vector<1x16x256xf32>
    %1 = vector.shape_cast %0 : vector<1x16x256xf32> to vector<16x256xf32>
    %c0_2 = arith.constant 0 : index
    %c0_3 = arith.constant 0 : index
    %2 = vector.load %arg1[%c0_2, %c0_3] : memref<16x16xf32, #tpu.memory_space<vmem>>, vector<16x16xf32>
    %cst = arith.constant dense<0.000000e+00> : vector<16x256xf32>
    %3 = tpu.matmul %2, %1, %cst {dimension_numbers = #tpu.dot_dimension_numbers<[1], [0], [0], [1], [0, 0, 1, 1], [], []>} : vector<16x16xf32>, vector<16x256xf32>, vector<16x256xf32> -> vector<16x256xf32>
    %c0_4 = arith.constant 0 : index
    %c0_5 = arith.constant 0 : index
    %4 = vector.load %arg2[%c0_4, %c0_5] : memref<256x256xf32, #tpu.memory_space<vmem>>, vector<256x256xf32>
    %cst_6 = arith.constant dense<0.000000e+00> : vector<16x256xf32>
    %5 = tpu.matmul %3, %4, %cst_6 {dimension_numbers = #tpu.dot_dimension_numbers<[1], [0], [0], [1], [0, 0, 1, 1], [], []>} : vector<16x256xf32>, vector<256x256xf32>, vector<16x256xf32> -> vector<16x256xf32>
    %c0_7 = arith.constant 0 : index
    %c0_8 = arith.constant 0 : index
    %6 = vector.load %arg3[%c0_7, %c0_8] : memref<96x16xf32, #tpu.memory_space<vmem>>, vector<96x16xf32>
    %cst_9 = arith.constant dense<0.000000e+00> : vector<96x256xf32>
    %7 = tpu.matmul %6, %5, %cst_9 {dimension_numbers = #tpu.dot_dimension_numbers<[1], [0], [0], [1], [0, 0, 1, 1], [], []>} : vector<96x16xf32>, vector<16x256xf32>, vector<96x256xf32> -> vector<96x256xf32>
    %cst_10 = arith.constant 0.000000e+00 : f32
    %8 = vector.broadcast %cst_10 : f32 to vector<96x256xf32>
    %9 = arith.maximumf %7, %8 : vector<96x256xf32>
    %c0_11 = arith.constant 0 : index
    %c0_12 = arith.constant 0 : index
    %c0_13 = arith.constant 0 : index
    %10 = vector.load %arg7[%c0_11, %c0_12, %c0_13] : memref<1x8x12xf32, #tpu.memory_space<vmem>>, vector<1x8x12xf32>
    %11 = vector.shape_cast %10 : vector<1x8x12xf32> to vector<8x12xf32>
    %c0_14 = arith.constant 0 : index
    %c0_15 = arith.constant 0 : index
    %12 = vector.load %arg4[%c0_14, %c0_15] : memref<12x96xf32, #tpu.memory_space<vmem>>, vector<12x96xf32>
    %cst_16 = arith.constant dense<0.000000e+00> : vector<8x96xf32>
    %13 = tpu.matmul %11, %12, %cst_16 {dimension_numbers = #tpu.dot_dimension_numbers<[1], [0], [0], [1], [0, 0, 1, 1], [], []>} : vector<8x12xf32>, vector<12x96xf32>, vector<8x96xf32> -> vector<8x96xf32>
    %c0_17 = arith.constant 0 : index
    %c0_18 = arith.constant 0 : index
    %14 = vector.load %arg5[%c0_17, %c0_18] : memref<8x96xf32, #tpu.memory_space<vmem>>, vector<8x96xf32>
    %15 = arith.mulf %13, %14 : vector<8x96xf32>
    %cst_19 = arith.constant dense<0.000000e+00> : vector<8x256xf32>
    %16 = tpu.matmul %15, %9, %cst_19 {dimension_numbers = #tpu.dot_dimension_numbers<[1], [0], [0], [1], [0, 0, 1, 1], [], []>} : vector<8x96xf32>, vector<96x256xf32>, vector<8x256xf32> -> vector<8x256xf32>
    %cst_20 = arith.constant 5.000000e-01 : f32
    %17 = vector.broadcast %cst_20 : f32 to vector<8x256xf32>
    %18 = arith.cmpf olt, %16, %17 : vector<8x256xf32>
    %cst_21 = arith.constant 0.000000e+00 : f32
    %cst_22 = arith.constant 1.000000e+00 : f32
    %19 = vector.broadcast %cst_21 : f32 to vector<8x256xf32>
    %20 = vector.broadcast %cst_22 : f32 to vector<8x256xf32>
    %21 = arith.select %18, %19, %20 : vector<8x256xi1>, vector<8x256xf32>
    %c0_23 = arith.constant 0 : index
    %c0_24 = arith.constant 0 : index
    %c0_25 = arith.constant 0 : index
    %22 = vector.load %arg10[%c0_23, %c0_24, %c0_25] : memref<1x8x256xf32, #tpu.memory_space<vmem>>, vector<1x8x256xf32>
    %23 = vector.shape_cast %22 : vector<1x8x256xf32> to vector<8x256xf32>
    %24 = vector.shape_cast %21 : vector<8x256xf32> to vector<1x8x256xf32>
    tpu.vector_store %arg10[%c0_23, %c0_24, %c0_25], %24 {strides = array<i32>} : memref<1x8x256xf32, #tpu.memory_space<vmem>>, vector<1x8x256xf32>,
    %c0_26 = arith.constant 0 : index
    %c0_27 = arith.constant 0 : index
    %c0_28 = arith.constant 0 : index
    %c0_29 = arith.constant 0 : index
    %25 = vector.load %arg8[%c0_26, %c0_27, %c0_28, %c0_29] : memref<1x3x8x256xf32, #tpu.memory_space<vmem>>, vector<1x3x8x256xf32>
    %26 = vector.shape_cast %25 : vector<1x3x8x256xf32> to vector<3x8x256xf32>
    %c0_30 = arith.constant 0 : index
    %c0_31 = arith.constant 0 : index
    %27 = vector.load %arg9[%c0_30, %c0_31] : memref<3x256xf32, #tpu.memory_space<vmem>>, vector<3x256xf32>
    %28 = vector.shape_cast %27 : vector<3x256xf32> to vector<3x1x256xf32>
    %29 = vector.shape_cast %28 : vector<3x1x256xf32> to vector<3x1x256xf32>
    %30 = vector.broadcast %29 : vector<3x1x256xf32> to vector<3x8x256xf32>
    %31 = vector.shape_cast %21 : vector<8x256xf32> to vector<1x8x256xf32>
    %32 = vector.shape_cast %31 : vector<1x8x256xf32> to vector<1x8x256xf32>
    %33 = vector.broadcast %32 : vector<1x8x256xf32> to vector<3x8x256xf32>
    %34 = arith.subf %26, %30 : vector<3x8x256xf32>
    %35 = arith.mulf %33, %34 : vector<3x8x256xf32>
    %36 = arith.addf %30, %35 : vector<3x8x256xf32>
    %c0_32 = arith.constant 0 : index
    %c0_33 = arith.constant 0 : index
    %c0_34 = arith.constant 0 : index
    %c0_35 = arith.constant 0 : index
    %37 = vector.load %arg11[%c0_32, %c0_33, %c0_34, %c0_35] : memref<1x3x8x256xf32, #tpu.memory_space<vmem>>, vector<1x3x8x256xf32>
    %38 = vector.shape_cast %37 : vector<1x3x8x256xf32> to vector<3x8x256xf32>
    %39 = vector.shape_cast %36 : vector<3x8x256xf32> to vector<1x3x8x256xf32>
    tpu.vector_store %arg11[%c0_32, %c0_33, %c0_34, %c0_35], %39 {strides = array<i32>} : memref<1x3x8x256xf32, #tpu.memory_space<vmem>>, vector<1x3x8x256xf32>,
    %40 = arith.subf %26, %35 : vector<3x8x256xf32>
    %c0_36 = arith.constant 0 : index
    %c0_37 = arith.constant 0 : index
    %c0_38 = arith.constant 0 : index
    %c0_39 = arith.constant 0 : index
    %41 = vector.load %arg12[%c0_36, %c0_37, %c0_38, %c0_39] : memref<1x3x8x256xf32, #tpu.memory_space<vmem>>, vector<1x3x8x256xf32>
    %42 = vector.shape_cast %41 : vector<1x3x8x256xf32> to vector<3x8x256xf32>
    %43 = vector.shape_cast %40 : vector<3x8x256xf32> to vector<1x3x8x256xf32>
    tpu.vector_store %arg12[%c0_36, %c0_37, %c0_38, %c0_39], %43 {strides = array<i32>} : memref<1x3x8x256xf32, #tpu.memory_space<vmem>>, vector<1x3x8x256xf32>,
    return
  }
  func.func @transform_0(%arg0: i32) -> (i32, i32) {
    %c0_i32 = arith.constant 0 : i32
    %c0_i32_0 = arith.constant 0 : i32
    %c0_i32_1 = arith.constant 0 : i32
    return %c0_i32, %c0_i32_0 : i32, i32
  }
  func.func @transform_1(%arg0: i32) -> (i32, i32) {
    %c0_i32 = arith.constant 0 : i32
    %c0_i32_0 = arith.constant 0 : i32
    %c0_i32_1 = arith.constant 0 : i32
    return %c0_i32, %c0_i32_0 : i32, i32
  }
  func.func @transform_2(%arg0: i32) -> (i32, i32) {
    %c0_i32 = arith.constant 0 : i32
    %c0_i32_0 = arith.constant 0 : i32
    %c0_i32_1 = arith.constant 0 : i32
    return %c0_i32, %c0_i32_0 : i32, i32
  }
  func.func @transform_3(%arg0: i32) -> (i32, i32) {
    %c0_i32 = arith.constant 0 : i32
    %c0_i32_0 = arith.constant 0 : i32
    %c0_i32_1 = arith.constant 0 : i32
    return %c0_i32, %c0_i32_0 : i32, i32
  }
  func.func @transform_4(%arg0: i32) -> (i32, i32) {
    %c0_i32 = arith.constant 0 : i32
    %c0_i32_0 = arith.constant 0 : i32
    %c0_i32_1 = arith.constant 0 : i32
    return %c0_i32, %c0_i32_0 : i32, i32
  }
  func.func @transform_5(%arg0: i32) -> (i32, i32, i32) {
    %c0_i32 = arith.constant 0 : i32
    %c0_i32_0 = arith.constant 0 : i32
    %c0_i32_1 = arith.constant 0 : i32
    return %arg0, %c0_i32, %c0_i32_0 : i32, i32, i32
  }
  func.func @transform_6(%arg0: i32) -> (i32, i32, i32) {
    %c0_i32 = arith.constant 0 : i32
    %c0_i32_0 = arith.constant 0 : i32
    %c0_i32_1 = arith.constant 0 : i32
    return %arg0, %c0_i32, %c0_i32_0 : i32, i32, i32
  }
  func.func @transform_7(%arg0: i32) -> (i32, i32, i32, i32) {
    %c0_i32 = arith.constant 0 : i32
    %c0_i32_0 = arith.constant 0 : i32
    %c0_i32_1 = arith.constant 0 : i32
    %c0_i32_2 = arith.constant 0 : i32
    return %arg0, %c0_i32, %c0_i32_0, %c0_i32_1 : i32, i32, i32, i32
  }
  func.func @transform_8(%arg0: i32) -> (i32, i32) {
    %c0_i32 = arith.constant 0 : i32
    %c0_i32_0 = arith.constant 0 : i32
    %c0_i32_1 = arith.constant 0 : i32
    return %c0_i32, %c0_i32_0 : i32, i32
  }
  func.func @transform_9(%arg0: i32) -> (i32, i32, i32) {
    %c0_i32 = arith.constant 0 : i32
    %c0_i32_0 = arith.constant 0 : i32
    %c0_i32_1 = arith.constant 0 : i32
    return %arg0, %c0_i32, %c0_i32_0 : i32, i32, i32
  }
  func.func @transform_10(%arg0: i32) -> (i32, i32, i32, i32) {
    %c0_i32 = arith.constant 0 : i32
    %c0_i32_0 = arith.constant 0 : i32
    %c0_i32_1 = arith.constant 0 : i32
    %c0_i32_2 = arith.constant 0 : i32
    return %arg0, %c0_i32, %c0_i32_0, %c0_i32_1 : i32, i32, i32, i32
  }
  func.func @transform_11(%arg0: i32) -> (i32, i32, i32, i32) {
    %c0_i32 = arith.constant 0 : i32
    %c0_i32_0 = arith.constant 0 : i32
    %c0_i32_1 = arith.constant 0 : i32
    %c0_i32_2 = arith.constant 0 : i32
    return %arg0, %c0_i32, %c0_i32_0, %c0_i32_1 : i32, i32, i32, i32
  }
}

</mosaic_0001>

<llo_original>
// kernel: my_model_forward.3
$region0: #{my_model_forward.3}
  #allocation0 [shape = 'u32[]', space=smem, size = 0x4, offset = 0x4, fixed_abs, tag = 'smem constant byte address 0x4 - core index']
  #allocation1 [shape = 'u32[144,128]{1,0:T(1,128)}', space=vmem, size = 0x12000, scoped, tag = 'internal scratch']
  %s0 = inlined_call_operand.vmem [shape: f32[16,16], index: 0, kind: input, shape index: {}]
  %s1 = inlined_call_operand.vmem [shape: f32[256,256], index: 1, kind: input, shape index: {}]
  %s2 = inlined_call_operand.vmem [shape: f32[96,16], index: 2, kind: input, shape index: {}]
  %s3 = inlined_call_operand.vmem [shape: f32[12,96], index: 3, kind: input, shape index: {}]
  %s4 = inlined_call_operand.vmem [shape: f32[8,96], index: 4, kind: input, shape index: {}]
  %s5 = inlined_call_operand.vmem [shape: f32[2,16,256], index: 5, kind: input, shape index: {}]
  %s6 = inlined_call_operand.vmem [shape: f32[2,8,12], index: 6, kind: input, shape index: {}]
  %s7 = inlined_call_operand.vmem [shape: f32[2,3,8,256], index: 7, kind: input, shape index: {}]
  %s8 = inlined_call_operand.vmem [shape: f32[3,256], index: 8, kind: input, shape index: {}]
  %s9 = inlined_call_operand.vmem [shape: f32[2,8,256], index: 9, kind: output, shape index: {0}]
  %s10 = inlined_call_operand.vmem [shape: f32[2,3,8,256], index: 10, kind: output, shape index: {1}]
  %s11 = inlined_call_operand.vmem [shape: f32[2,3,8,256], index: 11, kind: output, shape index: {2}]
  %12 = xla_tuple %s9, %s10, %s11
  %s13 = sld [smem:[#allocation0]]
  $region85: #{my_model_forward.3} parent=0
    _
  %s15 = ssub.s32 1, %s13
  %s16 = scalar_select 0, %s15, %s13
  loop: start=0, step=1, limit=4
  $region2: #{my_model_forward.3} parent=0 // loop_pre_header
    _
  $region3: #{my_model_forward.3} parent=0 // loop_header
    %s18 = sphi 0, %s22
    %p19 = scmp.ge.s32.totalorder %s18, 4
    %s26 = sphi 0, %s26
    %s28 = sphi 0, %s26
    %s29 = sphi 0, %s28
    %s43 = sphi 0, %s29
    %s47 = sphi 0, %s47
    %s49 = sphi 0, %s47
    %s50 = sphi 0, %s49
    %s64 = sphi 0, %s50
    %s68 = sphi 0, %s68
    %s70 = sphi 0, %s68
    %s71 = sphi 0, %s70
    %s85 = sphi 0, %s71
    %s89 = sphi 0, %s89
    %s91 = sphi 0, %s89
    %s92 = sphi 0, %s91
    %s106 = sphi 0, %s92
    %s110 = sphi 0, %s110
    %s112 = sphi 0, %s110
    %s113 = sphi 0, %s112
    %s127 = sphi 0, %s113
    %s133 = sphi 0, %s135
    %s136 = sphi 0, %s133
    %s137 = sphi 0, %s136
    %s153 = sphi 0, %s137
    %s159 = sphi 0, %s161
    %s162 = sphi 0, %s159
    %s163 = sphi 0, %s162
    %s179 = sphi 0, %s163
    %s185 = sphi 0, %s187
    %s188 = sphi 0, %s185
    %s189 = sphi 0, %s188
    %s205 = sphi 0, %s189
    %s209 = sphi 0, %s209
    %s211 = sphi 0, %s209
    %s212 = sphi 0, %s211
    %s226 = sphi 0, %s212
    %s232 = sphi 0, %s234
    %s235 = sphi 0, %s232
    %s236 = sphi 0, %s235
    %s252 = sphi 0, %s236
    %s258 = sphi 0, %s260
    %s261 = sphi 0, %s258
    %s262 = sphi 0, %s261
    %s278 = sphi 0, %s262
    %s284 = sphi 0, %s286
    %s287 = sphi 0, %s284
    %s288 = sphi 0, %s287
    %s304 = sphi 0, %s288
  $region4: #{my_model_forward.3} parent=0 // loop_header_branch
    %21 = sbr.rel (%p19) target = $region8
  $region5: #{my_model_forward.3} parent=0 // loop_body
    %s23 = ssub.s32 %s18, 1
    %s24 = ssub.s32 %s18, 2
    %s25 = sadd.s32 %s18, 1
    %s27 = sadd.s32 %s26, 1
    %p30 = scmp.eq.s32.totalorder %s18, 1
    %p31 = scmp.ne.s32.totalorder %s26, %s28
    %p32 = scmp.eq.s32.totalorder %s18, 0
    %p33 = por %p31, %p32
    %p34 = scmp.ne.s32.totalorder %s26, %s28
    %p35 = scmp.eq.s32.totalorder %s23, 1
    %p36 = por %p34, %p35
    %p37 = scmp.ne.s32.totalorder %s28, %s29
    %p38 = scmp.eq.s32.totalorder %s23, 0
    %p39 = por %p37, %p38
    %p40 = scmp.ne.s32.totalorder %s28, %s29
    %p41 = scmp.eq.s32.totalorder %s24, 1
    %p42 = por %p40, %p41
    %p44 = scmp.ne.s32.totalorder %s29, %s43
    %p45 = scmp.eq.s32.totalorder %s24, 0
    %p46 = por %p44, %p45
    %s48 = sadd.s32 %s47, 1
    %p51 = scmp.eq.s32.totalorder %s18, 1
    %p52 = scmp.ne.s32.totalorder %s47, %s49
    %p53 = scmp.eq.s32.totalorder %s18, 0
    %p54 = por %p52, %p53
    %p55 = scmp.ne.s32.totalorder %s47, %s49
    %p56 = scmp.eq.s32.totalorder %s23, 1
    %p57 = por %p55, %p56
    %p58 = scmp.ne.s32.totalorder %s49, %s50
    %p59 = scmp.eq.s32.totalorder %s23, 0
    %p60 = por %p58, %p59
    %p61 = scmp.ne.s32.totalorder %s49, %s50
    %p62 = scmp.eq.s32.totalorder %s24, 1
    %p63 = por %p61, %p62
    %p65 = scmp.ne.s32.totalorder %s50, %s64
    %p66 = scmp.eq.s32.totalorder %s24, 0
    %p67 = por %p65, %p66
    %s69 = sadd.s32 %s68, 1
    %p72 = scmp.eq.s32.totalorder %s18, 1
    %p73 = scmp.ne.s32.totalorder %s68, %s70
    %p74 = scmp.eq.s32.totalorder %s18, 0
    %p75 = por %p73, %p74
    %p76 = scmp.ne.s32.totalorder %s68, %s70
    %p77 = scmp.eq.s32.totalorder %s23, 1
    %p78 = por %p76, %p77
    %p79 = scmp.ne.s32.totalorder %s70, %s71
    %p80 = scmp.eq.s32.totalorder %s23, 0
    %p81 = por %p79, %p80
    %p82 = scmp.ne.s32.totalorder %s70, %s71
    %p83 = scmp.eq.s32.totalorder %s24, 1
    %p84 = por %p82, %p83
    %p86 = scmp.ne.s32.totalorder %s71, %s85
    %p87 = scmp.eq.s32.totalorder %s24, 0
    %p88 = por %p86, %p87
    %s90 = sadd.s32 %s89, 1
    %p93 = scmp.eq.s32.totalorder %s18, 1
    %p94 = scmp.ne.s32.totalorder %s89, %s91
    %p95 = scmp.eq.s32.totalorder %s18, 0
    %p96 = por %p94, %p95
    %p97 = scmp.ne.s32.totalorder %s89, %s91
    %p98 = scmp.eq.s32.totalorder %s23, 1
    %p99 = por %p97, %p98
    %p100 = scmp.ne.s32.totalorder %s91, %s92
    %p101 = scmp.eq.s32.totalorder %s23, 0
    %p102 = por %p100, %p101
    %p103 = scmp.ne.s32.totalorder %s91, %s92
    %p104 = scmp.eq.s32.totalorder %s24, 1
    %p105 = por %p103, %p104
    %p107 = scmp.ne.s32.totalorder %s92, %s106
    %p108 = scmp.eq.s32.totalorder %s24, 0
    %p109 = por %p107, %p108
    %s111 = sadd.s32 %s110, 1
    %p114 = scmp.eq.s32.totalorder %s18, 1
    %p115 = scmp.ne.s32.totalorder %s110, %s112
    %p116 = scmp.eq.s32.totalorder %s18, 0
    %p117 = por %p115, %p116
    %p118 = scmp.ne.s32.totalorder %s110, %s112
    %p119 = scmp.eq.s32.totalorder %s23, 1
    %p120 = por %p118, %p119
    %p121 = scmp.ne.s32.totalorder %s112, %s113
    %p122 = scmp.eq.s32.totalorder %s23, 0
    %p123 = por %p121, %p122
    %p124 = scmp.ne.s32.totalorder %s112, %s113
    %p125 = scmp.eq.s32.totalorder %s24, 1
    %p126 = por %p124, %p125
    %p128 = scmp.ne.s32.totalorder %s113, %s127
    %p129 = scmp.eq.s32.totalorder %s24, 0
    %p130 = por %p128, %p129
    %s131 = ssub.s32 %s18, %s25
    %p132 = scmp.eq.s32.totalorder %s131, 0
    %s134 = sadd.s32 %s133, 1
    %s135 = scalar_select %p132, %s133, %s134
    %p138 = pneg %p132
    %p139 = scmp.eq.s32.totalorder %s18, 1
    %p140 = por %p138, %p139
    %p141 = scmp.ne.s32.totalorder %s133, %s136
    %p142 = scmp.eq.s32.totalorder %s18, 0
    %p143 = por %p141, %p142
    %p144 = scmp.ne.s32.totalorder %s133, %s136
    %p145 = scmp.eq.s32.totalorder %s23, 1
    %p146 = por %p144, %p145
    %p147 = scmp.ne.s32.totalorder %s136, %s137
    %p148 = scmp.eq.s32.totalorder %s23, 0
    %p149 = por %p147, %p148
    %p150 = scmp.ne.s32.totalorder %s136, %s137
    %p151 = scmp.eq.s32.totalorder %s24, 1
    %p152 = por %p150, %p151
    %p154 = scmp.ne.s32.totalorder %s137, %s153
    %p155 = scmp.eq.s32.totalorder %s24, 0
    %p156 = por %p154, %p155
    %s157 = ssub.s32 %s18, %s25
    %p158 = scmp.eq.s32.totalorder %s157, 0
    %s160 = sadd.s32 %s159, 1
    %s161 = scalar_select %p158, %s159, %s160
    %p164 = pneg %p158
    %p165 = scmp.eq.s32.totalorder %s18, 1
    %p166 = por %p164, %p165
    %p167 = scmp.ne.s32.totalorder %s159, %s162
    %p168 = scmp.eq.s32.totalorder %s18, 0
    %p169 = por %p167, %p168
    %p170 = scmp.ne.s32.totalorder %s159, %s162
    %p171 = scmp.eq.s32.totalorder %s23, 1
    %p172 = por %p170, %p171
    %p173 = scmp.ne.s32.totalorder %s162, %s163
    %p174 = scmp.eq.s32.totalorder %s23, 0
    %p175 = por %p173, %p174
    %p176 = scmp.ne.s32.totalorder %s162, %s163
    %p177 = scmp.eq.s32.totalorder %s24, 1
    %p178 = por %p176, %p177
    %p180 = scmp.ne.s32.totalorder %s163, %s179
    %p181 = scmp.eq.s32.totalorder %s24, 0
    %p182 = por %p180, %p181
    %s183 = ssub.s32 %s18, %s25
    %p184 = scmp.eq.s32.totalorder %s183, 0
    %s186 = sadd.s32 %s185, 1
    %s187 = scalar_select %p184, %s185, %s186
    %p190 = pneg %p184
    %p191 = scmp.eq.s32.totalorder %s18, 1
    %p192 = por %p190, %p191
    %p193 = scmp.ne.s32.totalorder %s185, %s188
    %p194 = scmp.eq.s32.totalorder %s18, 0
    %p195 = por %p193, %p194
    %p196 = scmp.ne.s32.totalorder %s185, %s188
    %p197 = scmp.eq.s32.totalorder %s23, 1
    %p198 = por %p196, %p197
    %p199 = scmp.ne.s32.totalorder %s188, %s189
    %p200 = scmp.eq.s32.totalorder %s23, 0
    %p201 = por %p199, %p200
    %p202 = scmp.ne.s32.totalorder %s188, %s189
    %p203 = scmp.eq.s32.totalorder %s24, 1
    %p204 = por %p202, %p203
    %p206 = scmp.ne.s32.totalorder %s189, %s205
    %p207 = scmp.eq.s32.totalorder %s24, 0
    %p208 = por %p206, %p207
    %s210 = sadd.s32 %s209, 1
    %p213 = scmp.eq.s32.totalorder %s18, 1
    %p214 = scmp.ne.s32.totalorder %s209, %s211
    %p215 = scmp.eq.s32.totalorder %s18, 0
    %p216 = por %p214, %p215
    %p217 = scmp.ne.s32.totalorder %s209, %s211
    %p218 = scmp.eq.s32.totalorder %s23, 1
    %p219 = por %p217, %p218
    %p220 = scmp.ne.s32.totalorder %s211, %s212
    %p221 = scmp.eq.s32.totalorder %s23, 0
    %p222 = por %p220, %p221
    %p223 = scmp.ne.s32.totalorder %s211, %s212
    %p224 = scmp.eq.s32.totalorder %s24, 1
    %p225 = por %p223, %p224
    %p227 = scmp.ne.s32.totalorder %s212, %s226
    %p228 = scmp.eq.s32.totalorder %s24, 0
    %p229 = por %p227, %p228
    %s230 = ssub.s32 %s18, %s25
    %p231 = scmp.eq.s32.totalorder %s230, 0
    %s233 = sadd.s32 %s232, 1
    %s234 = scalar_select %p231, %s232, %s233
    %p237 = pneg %p231
    %p238 = scmp.eq.s32.totalorder %s18, 1
    %p239 = por %p237, %p238
    %p240 = scmp.ne.s32.totalorder %s232, %s235
    %p241 = scmp.eq.s32.totalorder %s18, 0
    %p242 = por %p240, %p241
    %p243 = scmp.ne.s32.totalorder %s232, %s235
    %p244 = scmp.eq.s32.totalorder %s23, 1
    %p245 = por %p243, %p244
    %p246 = scmp.ne.s32.totalorder %s235, %s236
    %p247 = scmp.eq.s32.totalorder %s23, 0
    %p248 = por %p246, %p247
    %p249 = scmp.ne.s32.totalorder %s235, %s236
    %p250 = scmp.eq.s32.totalorder %s24, 1
    %p251 = por %p249, %p250
    %p253 = scmp.ne.s32.totalorder %s236, %s252
    %p254 = scmp.eq.s32.totalorder %s24, 0
    %p255 = por %p253, %p254
    %s256 = ssub.s32 %s18, %s25
    %p257 = scmp.eq.s32.totalorder %s256, 0
    %s259 = sadd.s32 %s258, 1
    %s260 = scalar_select %p257, %s258, %s259
    %p263 = pneg %p257
    %p264 = scmp.eq.s32.totalorder %s18, 1
    %p265 = por %p263, %p264
    %p266 = scmp.ne.s32.totalorder %s258, %s261
    %p267 = scmp.eq.s32.totalorder %s18, 0
    %p268 = por %p266, %p267
    %p269 = scmp.ne.s32.totalorder %s258, %s261
    %p270 = scmp.eq.s32.totalorder %s23, 1
    %p271 = por %p269, %p270
    %p272 = scmp.ne.s32.totalorder %s261, %s262
    %p273 = scmp.eq.s32.totalorder %s23, 0
    %p274 = por %p272, %p273
    %p275 = scmp.ne.s32.totalorder %s261, %s262
    %p276 = scmp.eq.s32.totalorder %s24, 1
    %p277 = por %p275, %p276
    %p279 = scmp.ne.s32.totalorder %s262, %s278
    %p280 = scmp.eq.s32.totalorder %s24, 0
    %p281 = por %p279, %p280
    %s282 = ssub.s32 %s18, %s25
    %p283 = scmp.eq.s32.totalorder %s282, 0
    %s285 = sadd.s32 %s284, 1
    %s286 = scalar_select %p283, %s284, %s285
    %p289 = pneg %p283
    %p290 = scmp.eq.s32.totalorder %s18, 1
    %p291 = por %p289, %p290
    %p292 = scmp.ne.s32.totalorder %s284, %s287
    %p293 = scmp.eq.s32.totalorder %s18, 0
    %p294 = por %p292, %p293
    %p295 = scmp.ne.s32.totalorder %s284, %s287
    %p296 = scmp.eq.s32.totalorder %s23, 1
    %p297 = por %p295, %p296
    %p298 = scmp.ne.s32.totalorder %s287, %s288
    %p299 = scmp.eq.s32.totalorder %s23, 0
    %p300 = por %p298, %p299
    %p301 = scmp.ne.s32.totalorder %s287, %s288
    %p302 = scmp.eq.s32.totalorder %s24, 1
    %p303 = por %p301, %p302
    %p305 = scmp.ne.s32.totalorder %s288, %s304
    %p306 = scmp.eq.s32.totalorder %s24, 0
    %p307 = por %p305, %p306
    %p308 = scmp.le.s32.totalorder 1, %s18
    %p309 = scmp.lt.s32.totalorder %s18, 3
    %p310 = pnand %p308, %p309
    %p311 = pneg %p310
    // Predicated region
    $region9: #{my_model_forward.3} parent=5 // pred_check
      _
    $region10: #{my_model_forward.3} parent=5 // pred_check_branch
      %313 = sbr.rel (%p310) target = $region12
    $region11: #{my_model_forward.3} parent=5 // pred_region
      %s314 = ssub.s32 %s18, 1
      // Predicated region
      $region13: #{my_model_forward.3} parent=11 // pred_check
        %p315 = pneg %p39
      $region14: #{my_model_forward.3} parent=11 // pred_check_branch
        %317 = sbr.rel (%p315) target = $region16
      $region15: #{my_model_forward.3} parent=11 // pred_region
        _
      $region16: #{my_model_forward.3} parent=11 // pred_fallthru
        _
      // Predicated region
      $region17: #{my_model_forward.3} parent=11 // pred_check
        %p318 = pneg %p60
      $region18: #{my_model_forward.3} parent=11 // pred_check_branch
        %320 = sbr.rel (%p318) target = $region20
      $region19: #{my_model_forward.3} parent=11 // pred_region
        _
      $region20: #{my_model_forward.3} parent=11 // pred_fallthru
        _
      // Predicated region
      $region21: #{my_model_forward.3} parent=11 // pred_check
        %p321 = pneg %p81
      $region22: #{my_model_forward.3} parent=11 // pred_check_branch
        %323 = sbr.rel (%p321) target = $region24
      $region23: #{my_model_forward.3} parent=11 // pred_region
        _
      $region24: #{my_model_forward.3} parent=11 // pred_fallthru
        _
      // Predicated region
      $region25: #{my_model_forward.3} parent=11 // pred_check
        %p324 = pneg %p102
      $region26: #{my_model_forward.3} parent=11 // pred_check_branch
        %326 = sbr.rel (%p324) target = $region28
      $region27: #{my_model_forward.3} parent=11 // pred_region
        _
      $region28: #{my_model_forward.3} parent=11 // pred_fallthru
        _
      // Predicated region
      $region29: #{my_model_forward.3} parent=11 // pred_check
        %p327 = pneg %p123
      $region30: #{my_model_forward.3} parent=11 // pred_check_branch
        %329 = sbr.rel (%p327) target = $region32
      $region31: #{my_model_forward.3} parent=11 // pred_region
        _
      $region32: #{my_model_forward.3} parent=11 // pred_fallthru
        _
      // Predicated region
      $region33: #{my_model_forward.3} parent=11 // pred_check
        %p330 = pneg %p222
      $region34: #{my_model_forward.3} parent=11 // pred_check_branch
        %332 = sbr.rel (%p330) target = $region36
      $region35: #{my_model_forward.3} parent=11 // pred_region
        _
      $region36: #{my_model_forward.3} parent=11 // pred_fallthru
        _
    $region12: #{my_model_forward.3} parent=5 // pred_fallthru
      _
    %p333 = scmp.lt.s32.totalorder %s18, 2
    // Predicated region
    $region37: #{my_model_forward.3} parent=5 // pred_check
      %p334 = pneg %p333
    $region38: #{my_model_forward.3} parent=5 // pred_check_branch
      %336 = sbr.rel (%p334) target = $region40
    $region39: #{my_model_forward.3} parent=5 // pred_region
      // Predicated region
      $region41: #{my_model_forward.3} parent=39 // pred_check
        %p337 = pneg %p143
      $region42: #{my_model_forward.3} parent=39 // pred_check_branch
        %339 = sbr.rel (%p337) target = $region44
      $region43: #{my_model_forward.3} parent=39 // pred_region
        %p340 = scmp.lt.s32.totalorder %s18, 1
        %s341 = scalar_select %p340, %s18, 1
        %s342 = smul.addr %s341, 4
        %s343 = smul.addr %s342, 8
        %s344 = scalar_lea.vmem %s5, %s343
      $region44: #{my_model_forward.3} parent=39 // pred_fallthru
        _
      // Predicated region
      $region45: #{my_model_forward.3} parent=39 // pred_check
        %p345 = pneg %p169
      $region46: #{my_model_forward.3} parent=39 // pred_check_branch
        %347 = sbr.rel (%p345) target = $region48
      $region47: #{my_model_forward.3} parent=39 // pred_region
        %p348 = scmp.lt.s32.totalorder %s18, 1
        %s349 = scalar_select %p348, %s18, 1
        %s350 = smul.addr %s349, 8
        %s351 = scalar_lea.vmem %s6, %s350
      $region48: #{my_model_forward.3} parent=39 // pred_fallthru
        _
      // Predicated region
      $region49: #{my_model_forward.3} parent=39 // pred_check
        %p352 = pneg %p195
      $region50: #{my_model_forward.3} parent=39 // pred_check_branch
        %354 = sbr.rel (%p352) target = $region52
      $region51: #{my_model_forward.3} parent=39 // pred_region
        %p355 = scmp.lt.s32.totalorder %s18, 1
        %s356 = scalar_select %p355, %s18, 1
        %s357 = smul.addr %s356, 6
        %s358 = smul.addr %s357, 8
        %s359 = scalar_lea.vmem %s7, %s358
      $region52: #{my_model_forward.3} parent=39 // pred_fallthru
        _
    $region40: #{my_model_forward.3} parent=5 // pred_fallthru
      _
    %p360 = scmp.le.s32.totalorder 1, %s18
    %p361 = scmp.lt.s32.totalorder %s18, 3
    %p362 = pnand %p360, %p361
    %p363 = pneg %p362
    // Predicated region
    $region53: #{my_model_forward.3} parent=5 // pred_check
      _
    $region54: #{my_model_forward.3} parent=5 // pred_check_branch
      %365 = sbr.rel (%p362) target = $region56
    $region55: #{my_model_forward.3} parent=5 // pred_region
      %s366 = ssub.s32 %s18, 1
      %p367 = pneg %p39
      %p368 = pneg %p36
      %p369 = pneg %p60
      %p370 = pneg %p57
      %p371 = pneg %p81
      %p372 = pneg %p78
      %p373 = pneg %p102
      %p374 = pneg %p99
      %p375 = pneg %p123
      %p376 = pneg %p120
      %p377 = scmp.lt.s32.totalorder %s23, 1
      %s378 = scalar_select %p377, %s23, 1
      %s379 = smul.addr %s378, 4
      %s380 = smul.addr %s379, 8
      %s381 = scalar_lea.vmem %s5, %s380
      %p382 = pneg %p149
      %p383 = pneg %p146
      %p384 = scmp.lt.s32.totalorder %s23, 1
      %s385 = scalar_select %p384, %s23, 1
      %s386 = smul.addr %s385, 8
      %s387 = scalar_lea.vmem %s6, %s386
      %p388 = pneg %p175
      %p389 = pneg %p172
      %p390 = scmp.lt.s32.totalorder %s23, 1
      %s391 = scalar_select %p390, %s23, 1
      %s392 = smul.addr %s391, 6
      %s393 = smul.addr %s392, 8
      %s394 = scalar_lea.vmem %s7, %s393
      %p395 = pneg %p201
      %p396 = pneg %p198
      %p397 = pneg %p222
      %p398 = pneg %p219
      %p399 = pneg %p248
      %p400 = pneg %p245
      %p401 = scmp.lt.s32.totalorder %s23, 1
      %s402 = scalar_select %p401, %s23, 1
      %s403 = smul.addr %s402, 2
      %s404 = smul.addr %s403, 8
      %s405 = scalar_lea.vmem %s9, %s404
      %p406 = pneg %p274
      %p407 = pneg %p271
      %p408 = scmp.lt.s32.totalorder %s23, 1
      %s409 = scalar_select %p408, %s23, 1
      %s410 = smul.addr %s409, 6
      %s411 = smul.addr %s410, 8
      %s412 = scalar_lea.vmem %s10, %s411
      %p413 = pneg %p300
      %p414 = pneg %p297
      %p415 = scmp.lt.s32.totalorder %s23, 1
      %s416 = scalar_select %p415, %s23, 1
      %s417 = smul.addr %s416, 6
      %s418 = smul.addr %s417, 8
      %s419 = scalar_lea.vmem %s11, %s418
      %p420 = scmp.lt.s32.totalorder %s23, 1
      %s421 = scalar_select %p420, %s23, 1
      %s422 = smul.addr %s421, 4
      %s423 = smul.addr %s422, 8
      %s424 = scalar_lea.vmem %s5, %s423
      %p425 = scmp.lt.s32.totalorder %s23, 1
      %s426 = scalar_select %p425, %s23, 1
      %s427 = smul.addr %s426, 8
      %s428 = scalar_lea.vmem %s6, %s427
      %p429 = scmp.lt.s32.totalorder %s23, 1
      %s430 = scalar_select %p429, %s23, 1
      %s431 = smul.addr %s430, 6
      %s432 = smul.addr %s431, 8
      %s433 = scalar_lea.vmem %s7, %s432
      %p434 = scmp.lt.s32.totalorder %s23, 1
      %s435 = scalar_select %p434, %s23, 1
      %s436 = smul.addr %s435, 2
      %s437 = smul.addr %s436, 8
      %s438 = scalar_lea.vmem %s9, %s437
      %p439 = scmp.lt.s32.totalorder %s23, 1
      %s440 = scalar_select %p439, %s23, 1
      %s441 = smul.addr %s440, 6
      %s442 = smul.addr %s441, 8
      %s443 = scalar_lea.vmem %s10, %s442
      %p444 = scmp.lt.s32.totalorder %s23, 1
      %s445 = scalar_select %p444, %s23, 1
      %s446 = smul.addr %s445, 6
      %s447 = smul.addr %s446, 8
      %s448 = scalar_lea.vmem %s11, %s447
      %v449 = vld [vmem:[%s424] sm:$0xff]
      %v450 = vld [vmem:[%s424 + $0x8] sm:$0xff]
      %v451 = vld [vmem:[%s424 + $0x10] sm:$0xff]
      %v452 = vld [vmem:[%s424 + $0x18] sm:$0xff]
      %v453 = vld [vmem:[%s0] sm:$0xff]
      %v454 = vld [vmem:[%s0 + $0x8] sm:$0xff]
      %vm455 = vcmask 130048
      %v457 = vsel %vm455, %v453, 0
      %v460 = vsel %vm455, %v454, 0
      %462 = vmatprep.subr.mxu0 0.0
      %463 = vmatpush1.msra.mxu0 0.0
      %464 = vmatprep.subr.mxu0 0.0
      %465 = vmatpush1.msra.mxu0 0.0
      %466 = vmatprep.subr.mxu0 0.0
      %467 = vmatpush1.msra.mxu0 0.0
      %468 = vmatprep.subr.mxu0 0.0
      %469 = vmatpush1.msra.mxu0 0.0
      %470 = vmatprep.subr.mxu0 0.0
      %471 = vmatpush1.msra.mxu0 0.0
      %472 = vmatprep.subr.mxu0 0.0
      %473 = vmatpush1.msra.mxu0 0.0
      %474 = vmatprep.subr.mxu0 0.0
      %475 = vmatpush1.msra.mxu0 0.0
      %476 = vmatprep.subr.mxu0 0.0
      %477 = vmatpush1.msra.mxu0 0.0
      %478 = vmatprep.subr.mxu0 0.0
      %479 = vmatpush1.msra.mxu0 0.0
      %480 = vmatprep.subr.mxu0 0.0
      %481 = vmatpush1.msra.mxu0 0.0
      %482 = vmatprep.subr.mxu0 0.0
      %483 = vmatpush1.msra.mxu0 0.0
      %484 = vmatprep.subr.mxu0 0.0
      %485 = vmatpush1.msra.mxu0 0.0
      %486 = vmatprep.subr.mxu0 0.0
      %487 = vmatpush1.msra.mxu0 0.0
      %488 = vmatprep.subr.mxu0 0.0
      %489 = vmatpush1.msra.mxu0 0.0
      %490 = vmatprep.subr.mxu0 %v452
      %491 = vmatpush1.msra.mxu0 %v451
      %492 = vmatprep.subr.mxu0 %v450
      %493 = vmatpush1.msra.mxu0 %v449
      %494 = vmatprep.subr.mxu0 0.0
      %495 = vmatpush2.msra.mxu0 0.0
      %496 = vmatprep.subr.mxu0 0.0
      %497 = vmatpush2.msra.mxu0 0.0
      %498 = vmatprep.subr.mxu0 0.0
      %499 = vmatpush2.msra.mxu0 0.0
      %500 = vmatprep.subr.mxu0 0.0
      %501 = vmatpush2.msra.mxu0 0.0
      %502 = vmatprep.subr.mxu0 0.0
      %503 = vmatpush2.msra.mxu0 0.0
      %504 = vmatprep.subr.mxu0 0.0
      %505 = vmatpush2.msra.mxu0 0.0
      %506 = vmatprep.subr.mxu0 0.0
      %507 = vmatpush2.msra.mxu0 0.0
      %508 = vmatprep.subr.mxu0 0.0
      %509 = vmatpush2.msra.mxu0 0.0
      %510 = vmatprep.subr.mxu0 0.0
      %511 = vmatpush2.msra.mxu0 0.0
      %512 = vmatprep.subr.mxu0 0.0
      %513 = vmatpush2.msra.mxu0 0.0
      %514 = vmatprep.subr.mxu0 0.0
      %515 = vmatpush2.msra.mxu0 0.0
      %516 = vmatprep.subr.mxu0 0.0
      %517 = vmatpush2.msra.mxu0 0.0
      %518 = vmatprep.subr.mxu0 0.0
      %519 = vmatpush2.msra.mxu0 0.0
      %520 = vmatprep.subr.mxu0 0.0
      %521 = vmatpush2.msra.mxu0 0.0
      %522 = vmatprep.subr.mxu0 0.0
      %523 = vmatpush2.msra.mxu0 0.0
      %524 = vmatprep.subr.mxu0 0.0
      %525 = vmatpush2.msra.mxu0 0.0
      %526 = vmatprep.mubr.f32.mxu0 0.0
      %527 = vmatmul.mubr.f32.gmra.mxu0 %v457
      %v528 = vpop.f32.mrf.mxu0
      %v529 = vadd.f32 0.0, %v528
      %v530 = vpop.f32.mrf.mxu0
      %v531 = vadd.f32 0.0, %v530
      %532 = vmatprep.mubr.f32.mxu0 0.0
      %533 = vmatmul.mubr.f32.gmra.mxu0 %v460
      %v534 = vpop.f32.mrf.mxu0
      %v535 = vadd.f32 0.0, %v534
      %v536 = vpop.f32.mrf.mxu0
      %v537 = vadd.f32 0.0, %v536
      %538 = vdwg.mxu0
      %v539 = vld [vmem:[%s1] sm:$0xff]
      %v540 = vld [vmem:[%s1 + $0x8] sm:$0xff]
      %v541 = vld [vmem:[%s1 + $0x10] sm:$0xff]
      %v542 = vld [vmem:[%s1 + $0x18] sm:$0xff]
      %v543 = vld [vmem:[%s1 + $0x20] sm:$0xff]
      %v544 = vld [vmem:[%s1 + $0x28] sm:$0xff]
      %v545 = vld [vmem:[%s1 + $0x30] sm:$0xff]
      %v546 = vld [vmem:[%s1 + $0x38] sm:$0xff]
      %v547 = vld [vmem:[%s1 + $0x40] sm:$0xff]
      %v548 = vld [vmem:[%s1 + $0x48] sm:$0xff]
      %v549 = vld [vmem:[%s1 + $0x50] sm:$0xff]
      %v550 = vld [vmem:[%s1 + $0x58] sm:$0xff]
      %v551 = vld [vmem:[%s1 + $0x60] sm:$0xff]
      %v552 = vld [vmem:[%s1 + $0x68] sm:$0xff]
      %v553 = vld [vmem:[%s1 + $0x70] sm:$0xff]
      %v554 = vld [vmem:[%s1 + $0x78] sm:$0xff]
      %v555 = vld [vmem:[%s1 + $0x80] sm:$0xff]
      %v556 = vld [vmem:[%s1 + $0x88] sm:$0xff]
      %v557 = vld [vmem:[%s1 + $0x90] sm:$0xff]
      %v558 = vld [vmem:[%s1 + $0x98] sm:$0xff]
      %v559 = vld [vmem:[%s1 + $0xa0] sm:$0xff]
      %v560 = vld [vmem:[%s1 + $0xa8] sm:$0xff]
      %v561 = vld [vmem:[%s1 + $0xb0] sm:$0xff]
      %v562 = vld [vmem:[%s1 + $0xb8] sm:$0xff]
      %v563 = vld [vmem:[%s1 + $0xc0] sm:$0xff]
      %v564 = vld [vmem:[%s1 + $0xc8] sm:$0xff]
      %v565 = vld [vmem:[%s1 + $0xd0] sm:$0xff]
      %v566 = vld [vmem:[%s1 + $0xd8] sm:$0xff]
      %v567 = vld [vmem:[%s1 + $0xe0] sm:$0xff]
      %v568 = vld [vmem:[%s1 + $0xe8] sm:$0xff]
      %v569 = vld [vmem:[%s1 + $0xf0] sm:$0xff]
      %v570 = vld [vmem:[%s1 + $0xf8] sm:$0xff]
      %v571 = vld [vmem:[%s1 + $0x100] sm:$0xff]
      %v572 = vld [vmem:[%s1 + $0x108] sm:$0xff]
      %v573 = vld [vmem:[%s1 + $0x110] sm:$0xff]
      %v574 = vld [vmem:[%s1 + $0x118] sm:$0xff]
      %v575 = vld [vmem:[%s1 + $0x120] sm:$0xff]
      %v576 = vld [vmem:[%s1 + $0x128] sm:$0xff]
      %v577 = vld [vmem:[%s1 + $0x130] sm:$0xff]
      %v578 = vld [vmem:[%s1 + $0x138] sm:$0xff]
      %v579 = vld [vmem:[%s1 + $0x140] sm:$0xff]
      %v580 = vld [vmem:[%s1 + $0x148] sm:$0xff]
      %v581 = vld [vmem:[%s1 + $0x150] sm:$0xff]
      %v582 = vld [vmem:[%s1 + $0x158] sm:$0xff]
      %v583 = vld [vmem:[%s1 + $0x160] sm:$0xff]
      %v584 = vld [vmem:[%s1 + $0x168] sm:$0xff]
      %v585 = vld [vmem:[%s1 + $0x170] sm:$0xff]
      %v586 = vld [vmem:[%s1 + $0x178] sm:$0xff]
      %v587 = vld [vmem:[%s1 + $0x180] sm:$0xff]
      %v588 = vld [vmem:[%s1 + $0x188] sm:$0xff]
      %v589 = vld [vmem:[%s1 + $0x190] sm:$0xff]
      %v590 = vld [vmem:[%s1 + $0x198] sm:$0xff]
      %v591 = vld [vmem:[%s1 + $0x1a0] sm:$0xff]
      %v592 = vld [vmem:[%s1 + $0x1a8] sm:$0xff]
      %v593 = vld [vmem:[%s1 + $0x1b0] sm:$0xff]
      %v594 = vld [vmem:[%s1 + $0x1b8] sm:$0xff]
      %v595 = vld [vmem:[%s1 + $0x1c0] sm:$0xff]
      %v596 = vld [vmem:[%s1 + $0x1c8] sm:$0xff]
      %v597 = vld [vmem:[%s1 + $0x1d0] sm:$0xff]
      %v598 = vld [vmem:[%s1 + $0x1d8] sm:$0xff]
      %v599 = vld [vmem:[%s1 + $0x1e0] sm:$0xff]
      %v600 = vld [vmem:[%s1 + $0x1e8] sm:$0xff]
      %v601 = vld [vmem:[%s1 + $0x1f0] sm:$0xff]
      %v602 = vld [vmem:[%s1 + $0x1f8] sm:$0xff]
      %603 = vmatprep.subr.mxu0 %v570
      %604 = vmatpush1.msra.mxu0 %v569
      %605 = vmatprep.subr.mxu0 %v568
      %606 = vmatpush1.msra.mxu0 %v567
      %607 = vmatprep.subr.mxu0 %v566
      %608 = vmatpush1.msra.mxu0 %v565
      %609 = vmatprep.subr.mxu0 %v564
      %610 = vmatpush1.msra.mxu0 %v563
      %611 = vmatprep.subr.mxu0 %v562
      %612 = vmatpush1.msra.mxu0 %v561
      %613 = vmatprep.subr.mxu0 %v560
      %614 = vmatpush1.msra.mxu0 %v559
      %615 = vmatprep.subr.mxu0 %v558
      %616 = vmatpush1.msra.mxu0 %v557
      %617 = vmatprep.subr.mxu0 %v556
      %618 = vmatpush1.msra.mxu0 %v555
      %619 = vmatprep.subr.mxu0 %v554
      %620 = vmatpush1.msra.mxu0 %v553
      %621 = vmatprep.subr.mxu0 %v552
      %622 = vmatpush1.msra.mxu0 %v551
      %623 = vmatprep.subr.mxu0 %v550
      %624 = vmatpush1.msra.mxu0 %v549
      %625 = vmatprep.subr.mxu0 %v548
      %626 = vmatpush1.msra.mxu0 %v547
      %627 = vmatprep.subr.mxu0 %v546
      %628 = vmatpush1.msra.mxu0 %v545
      %629 = vmatprep.subr.mxu0 %v544
      %630 = vmatpush1.msra.mxu0 %v543
      %631 = vmatprep.subr.mxu0 %v542
      %632 = vmatpush1.msra.mxu0 %v541
      %633 = vmatprep.subr.mxu0 %v540
      %634 = vmatpush1.msra.mxu0 %v539
      %635 = vmatprep.subr.mxu0 %v602
      %636 = vmatpush2.msra.mxu0 %v601
      %637 = vmatprep.subr.mxu0 %v600
      %638 = vmatpush2.msra.mxu0 %v599
      %639 = vmatprep.subr.mxu0 %v598
      %640 = vmatpush2.msra.mxu0 %v597
      %641 = vmatprep.subr.mxu0 %v596
      %642 = vmatpush2.msra.mxu0 %v595
      %643 = vmatprep.subr.mxu0 %v594
      %644 = vmatpush2.msra.mxu0 %v593
      %645 = vmatprep.subr.mxu0 %v592
      %646 = vmatpush2.msra.mxu0 %v591
      %647 = vmatprep.subr.mxu0 %v590
      %648 = vmatpush2.msra.mxu0 %v589
      %649 = vmatprep.subr.mxu0 %v588
      %650 = vmatpush2.msra.mxu0 %v587
      %651 = vmatprep.subr.mxu0 %v586
      %652 = vmatpush2.msra.mxu0 %v585
      %653 = vmatprep.subr.mxu0 %v584
      %654 = vmatpush2.msra.mxu0 %v583
      %655 = vmatprep.subr.mxu0 %v582
      %656 = vmatpush2.msra.mxu0 %v581
      %657 = vmatprep.subr.mxu0 %v580
      %658 = vmatpush2.msra.mxu0 %v579
      %659 = vmatprep.subr.mxu0 %v578
      %660 = vmatpush2.msra.mxu0 %v577
      %661 = vmatprep.subr.mxu0 %v576
      %662 = vmatpush2.msra.mxu0 %v575
      %663 = vmatprep.subr.mxu0 %v574
      %664 = vmatpush2.msra.mxu0 %v573
      %665 = vmatprep.subr.mxu0 %v572
      %666 = vmatpush2.msra.mxu0 %v571
      %667 = vmatprep.mubr.f32.mxu0 %v531
      %668 = vmatmul.mubr.f32.gmra.mxu0 %v529
      %v669 = vpop.f32.mrf.mxu0
      %v670 = vadd.f32 0.0, %v669
      %v671 = vpop.f32.mrf.mxu0
      %v672 = vadd.f32 0.0, %v671
      %673 = vmatprep.mubr.f32.mxu0 %v537
      %674 = vmatmul.mubr.f32.gmra.mxu0 %v535
      %v675 = vpop.f32.mrf.mxu0
      %v676 = vadd.f32 0.0, %v675
      %v677 = vpop.f32.mrf.mxu0
      %v678 = vadd.f32 0.0, %v677
      %679 = vdwg.mxu0
      %v680 = vld [vmem:[%s2] sm:$0xff]
      %v681 = vld [vmem:[%s2 + $0x8] sm:$0xff]
      %v682 = vld [vmem:[%s2 + $0x10] sm:$0xff]
      %v683 = vld [vmem:[%s2 + $0x18] sm:$0xff]
      %v684 = vld [vmem:[%s2 + $0x20] sm:$0xff]
      %v685 = vld [vmem:[%s2 + $0x28] sm:$0xff]
      %v686 = vld [vmem:[%s2 + $0x30] sm:$0xff]
      %v687 = vld [vmem:[%s2 + $0x38] sm:$0xff]
      %v688 = vld [vmem:[%s2 + $0x40] sm:$0xff]
      %v689 = vld [vmem:[%s2 + $0x48] sm:$0xff]
      %v690 = vld [vmem:[%s2 + $0x50] sm:$0xff]
      %v691 = vld [vmem:[%s2 + $0x58] sm:$0xff]
      %v693 = vsel %vm455, %v680, 0
      %v696 = vsel %vm455, %v681, 0
      %v699 = vsel %vm455, %v682, 0
      %v702 = vsel %vm455, %v683, 0
      %v705 = vsel %vm455, %v684, 0
      %v708 = vsel %vm455, %v685, 0
      %v711 = vsel %vm455, %v686, 0
      %v714 = vsel %vm455, %v687, 0
      %v717 = vsel %vm455, %v688, 0
      %v720 = vsel %vm455, %v689, 0
      %v723 = vsel %vm455, %v690, 0
      %v726 = vsel %vm455, %v691, 0
      %728 = vmatprep.subr.mxu0 0.0
      %729 = vmatpush1.msra.mxu0 0.0
      %730 = vmatprep.subr.mxu0 0.0
      %731 = vmatpush1.msra.mxu0 0.0
      %732 = vmatprep.subr.mxu0 0.0
      %733 = vmatpush1.msra.mxu0 0.0
      %734 = vmatprep.subr.mxu0 0.0
      %735 = vmatpush1.msra.mxu0 0.0
      %736 = vmatprep.subr.mxu0 0.0
      %737 = vmatpush1.msra.mxu0 0.0
      %738 = vmatprep.subr.mxu0 0.0
      %739 = vmatpush1.msra.mxu0 0.0
      %740 = vmatprep.subr.mxu0 0.0
      %741 = vmatpush1.msra.mxu0 0.0
      %742 = vmatprep.subr.mxu0 0.0
      %743 = vmatpush1.msra.mxu0 0.0
      %744 = vmatprep.subr.mxu0 0.0
      %745 = vmatpush1.msra.mxu0 0.0
      %746 = vmatprep.subr.mxu0 0.0
      %747 = vmatpush1.msra.mxu0 0.0
      %748 = vmatprep.subr.mxu0 0.0
      %749 = vmatpush1.msra.mxu0 0.0
      %750 = vmatprep.subr.mxu0 0.0
      %751 = vmatpush1.msra.mxu0 0.0
      %752 = vmatprep.subr.mxu0 0.0
      %753 = vmatpush1.msra.mxu0 0.0
      %754 = vmatprep.subr.mxu0 0.0
      %755 = vmatpush1.msra.mxu0 0.0
      %756 = vmatprep.subr.mxu0 %v678
      %757 = vmatpush1.msra.mxu0 %v676
      %758 = vmatprep.subr.mxu0 %v672
      %759 = vmatpush1.msra.mxu0 %v670
      %760 = vmatprep.subr.mxu0 0.0
      %761 = vmatpush2.msra.mxu0 0.0
      %762 = vmatprep.subr.mxu0 0.0
      %763 = vmatpush2.msra.mxu0 0.0
      %764 = vmatprep.subr.mxu0 0.0
      %765 = vmatpush2.msra.mxu0 0.0
      %766 = vmatprep.subr.mxu0 0.0
      %767 = vmatpush2.msra.mxu0 0.0
      %768 = vmatprep.subr.mxu0 0.0
      %769 = vmatpush2.msra.mxu0 0.0
      %770 = vmatprep.subr.mxu0 0.0
      %771 = vmatpush2.msra.mxu0 0.0
      %772 = vmatprep.subr.mxu0 0.0
      %773 = vmatpush2.msra.mxu0 0.0
      %774 = vmatprep.subr.mxu0 0.0
      %775 = vmatpush2.msra.mxu0 0.0
      %776 = vmatprep.subr.mxu0 0.0
      %777 = vmatpush2.msra.mxu0 0.0
      %778 = vmatprep.subr.mxu0 0.0
      %779 = vmatpush2.msra.mxu0 0.0
      %780 = vmatprep.subr.mxu0 0.0
      %781 = vmatpush2.msra.mxu0 0.0
      %782 = vmatprep.subr.mxu0 0.0
      %783 = vmatpush2.msra.mxu0 0.0
      %784 = vmatprep.subr.mxu0 0.0
      %785 = vmatpush2.msra.mxu0 0.0
      %786 = vmatprep.subr.mxu0 0.0
      %787 = vmatpush2.msra.mxu0 0.0
      %788 = vmatprep.subr.mxu0 0.0
      %789 = vmatpush2.msra.mxu0 0.0
      %790 = vmatprep.subr.mxu0 0.0
      %791 = vmatpush2.msra.mxu0 0.0
      %792 = vmatprep.mubr.f32.mxu0 0.0
      %793 = vmatmul.mubr.f32.gmra.mxu0 %v693
      %v794 = vpop.f32.mrf.mxu0
      %v795 = vadd.f32 0.0, %v794
      %v796 = vpop.f32.mrf.mxu0
      %v797 = vadd.f32 0.0, %v796
      %798 = vmatprep.mubr.f32.mxu0 0.0
      %799 = vmatmul.mubr.f32.gmra.mxu0 %v696
      %v800 = vpop.f32.mrf.mxu0
      %v801 = vadd.f32 0.0, %v800
      %v802 = vpop.f32.mrf.mxu0
      %v803 = vadd.f32 0.0, %v802
      %804 = vmatprep.mubr.f32.mxu0 0.0
      %805 = vmatmul.mubr.f32.gmra.mxu0 %v699
      %v806 = vpop.f32.mrf.mxu0
      %v807 = vadd.f32 0.0, %v806
      %v808 = vpop.f32.mrf.mxu0
      %v809 = vadd.f32 0.0, %v808
      %810 = vmatprep.mubr.f32.mxu0 0.0
      %811 = vmatmul.mubr.f32.gmra.mxu0 %v702
      %v812 = vpop.f32.mrf.mxu0
      %v813 = vadd.f32 0.0, %v812
      %v814 = vpop.f32.mrf.mxu0
      %v815 = vadd.f32 0.0, %v814
      %816 = vmatprep.mubr.f32.mxu0 0.0
      %817 = vmatmul.mubr.f32.gmra.mxu0 %v705
      %v818 = vpop.f32.mrf.mxu0
      %v819 = vadd.f32 0.0, %v818
      %v820 = vpop.f32.mrf.mxu0
      %v821 = vadd.f32 0.0, %v820
      %822 = vmatprep.mubr.f32.mxu0 0.0
      %823 = vmatmul.mubr.f32.gmra.mxu0 %v708
      %v824 = vpop.f32.mrf.mxu0
      %v825 = vadd.f32 0.0, %v824
      %v826 = vpop.f32.mrf.mxu0
      %v827 = vadd.f32 0.0, %v826
      %828 = vmatprep.mubr.f32.mxu0 0.0
      %829 = vmatmul.mubr.f32.gmra.mxu0 %v711
      %v830 = vpop.f32.mrf.mxu0
      %v831 = vadd.f32 0.0, %v830
      %v832 = vpop.f32.mrf.mxu0
      %v833 = vadd.f32 0.0, %v832
      %834 = vmatprep.mubr.f32.mxu0 0.0
      %835 = vmatmul.mubr.f32.gmra.mxu0 %v714
      %v836 = vpop.f32.mrf.mxu0
      %v837 = vadd.f32 0.0, %v836
      %v838 = vpop.f32.mrf.mxu0
      %v839 = vadd.f32 0.0, %v838
      %840 = vmatprep.mubr.f32.mxu0 0.0
      %841 = vmatmul.mubr.f32.gmra.mxu0 %v717
      %v842 = vpop.f32.mrf.mxu0
      %v843 = vadd.f32 0.0, %v842
      %v844 = vpop.f32.mrf.mxu0
      %v845 = vadd.f32 0.0, %v844
      %846 = vmatprep.mubr.f32.mxu0 0.0
      %847 = vmatmul.mubr.f32.gmra.mxu0 %v720
      %v848 = vpop.f32.mrf.mxu0
      %v849 = vadd.f32 0.0, %v848
      %v850 = vpop.f32.mrf.mxu0
      %v851 = vadd.f32 0.0, %v850
      %852 = vmatprep.mubr.f32.mxu0 0.0
      %853 = vmatmul.mubr.f32.gmra.mxu0 %v723
      %v854 = vpop.f32.mrf.mxu0
      %v855 = vadd.f32 0.0, %v854
      %v856 = vpop.f32.mrf.mxu0
      %v857 = vadd.f32 0.0, %v856
      %858 = vmatprep.mubr.f32.mxu0 0.0
      %859 = vmatmul.mubr.f32.gmra.mxu0 %v726
      %v860 = vpop.f32.mrf.mxu0
      %v861 = vadd.f32 0.0, %v860
      %v862 = vpop.f32.mrf.mxu0
      %v863 = vadd.f32 0.0, %v862
      %864 = vdwg.mxu0
      %v865 = vmax.f32 %v795, 0.0
      %v866 = vmax.f32 %v797, 0.0
      %v867 = vmax.f32 %v801, 0.0
      %v868 = vmax.f32 %v803, 0.0
      %v869 = vmax.f32 %v807, 0.0
      %v870 = vmax.f32 %v809, 0.0
      %v871 = vmax.f32 %v813, 0.0
      %v872 = vmax.f32 %v815, 0.0
      %v873 = vmax.f32 %v819, 0.0
      %v874 = vmax.f32 %v821, 0.0
      %v875 = vmax.f32 %v825, 0.0
      %v876 = vmax.f32 %v827, 0.0
      %v877 = vmax.f32 %v831, 0.0
      %v878 = vmax.f32 %v833, 0.0
      %v879 = vmax.f32 %v837, 0.0
      %v880 = vmax.f32 %v839, 0.0
      %v881 = vmax.f32 %v843, 0.0
      %v882 = vmax.f32 %v845, 0.0
      %v883 = vmax.f32 %v849, 0.0
      %v884 = vmax.f32 %v851, 0.0
      %v885 = vmax.f32 %v855, 0.0
      %v886 = vmax.f32 %v857, 0.0
      %v887 = vmax.f32 %v861, 0.0
      %v888 = vmax.f32 %v863, 0.0
      %v889 = vld [vmem:[%s428] sm:$0xff]
      %v890 = vld [vmem:[%s3] sm:$0xff]
      %v891 = vld [vmem:[%s3 + $0x8] sm:$0xf]
      %vm892 = vcmask 97280
      %v894 = vsel %vm892, %v889, 0
      %vm896 = vcmask 1043456
      %v898 = vsel %vm896, %v891, 0
      %900 = vmatprep.subr.mxu0 0.0
      %901 = vmatpush1.msra.mxu0 0.0
      %902 = vmatprep.subr.mxu0 0.0
      %903 = vmatpush1.msra.mxu0 0.0
      %904 = vmatprep.subr.mxu0 0.0
      %905 = vmatpush1.msra.mxu0 0.0
      %906 = vmatprep.subr.mxu0 0.0
      %907 = vmatpush1.msra.mxu0 0.0
      %908 = vmatprep.subr.mxu0 0.0
      %909 = vmatpush1.msra.mxu0 0.0
      %910 = vmatprep.subr.mxu0 0.0
      %911 = vmatpush1.msra.mxu0 0.0
      %912 = vmatprep.subr.mxu0 0.0
      %913 = vmatpush1.msra.mxu0 0.0
      %914 = vmatprep.subr.mxu0 0.0
      %915 = vmatpush1.msra.mxu0 0.0
      %916 = vmatprep.subr.mxu0 0.0
      %917 = vmatpush1.msra.mxu0 0.0
      %918 = vmatprep.subr.mxu0 0.0
      %919 = vmatpush1.msra.mxu0 0.0
      %920 = vmatprep.subr.mxu0 0.0
      %921 = vmatpush1.msra.mxu0 0.0
      %922 = vmatprep.subr.mxu0 0.0
      %923 = vmatpush1.msra.mxu0 0.0
      %924 = vmatprep.subr.mxu0 0.0
      %925 = vmatpush1.msra.mxu0 0.0
      %926 = vmatprep.subr.mxu0 0.0
      %927 = vmatpush1.msra.mxu0 0.0
      %928 = vmatprep.subr.mxu0 0.0
      %929 = vmatpush1.msra.mxu0 %v898
      %930 = vmatprep.subr.mxu0 0.0
      %931 = vmatpush1.msra.mxu0 %v890
      %932 = vmatprep.subr.mxu0 0.0
      %933 = vmatpush2.msra.mxu0 0.0
      %934 = vmatprep.subr.mxu0 0.0
      %935 = vmatpush2.msra.mxu0 0.0
      %936 = vmatprep.subr.mxu0 0.0
      %937 = vmatpush2.msra.mxu0 0.0
      %938 = vmatprep.subr.mxu0 0.0
      %939 = vmatpush2.msra.mxu0 0.0
      %940 = vmatprep.subr.mxu0 0.0
      %941 = vmatpush2.msra.mxu0 0.0
      %942 = vmatprep.subr.mxu0 0.0
      %943 = vmatpush2.msra.mxu0 0.0
      %944 = vmatprep.subr.mxu0 0.0
      %945 = vmatpush2.msra.mxu0 0.0
      %946 = vmatprep.subr.mxu0 0.0
      %947 = vmatpush2.msra.mxu0 0.0
      %948 = vmatprep.subr.mxu0 0.0
      %949 = vmatpush2.msra.mxu0 0.0
      %950 = vmatprep.subr.mxu0 0.0
      %951 = vmatpush2.msra.mxu0 0.0
      %952 = vmatprep.subr.mxu0 0.0
      %953 = vmatpush2.msra.mxu0 0.0
      %954 = vmatprep.subr.mxu0 0.0
      %955 = vmatpush2.msra.mxu0 0.0
      %956 = vmatprep.subr.mxu0 0.0
      %957 = vmatpush2.msra.mxu0 0.0
      %958 = vmatprep.subr.mxu0 0.0
      %959 = vmatpush2.msra.mxu0 0.0
      %960 = vmatprep.subr.mxu0 0.0
      %961 = vmatpush2.msra.mxu0 0.0
      %962 = vmatprep.subr.mxu0 0.0
      %963 = vmatpush2.msra.mxu0 0.0
      %964 = vmatprep.mubr.f32.mxu0 0.0
      %965 = vmatmul.mubr.f32.gmra.mxu0 %v894
      %v966 = vpop.f32.mrf.mxu0
      %v967 = vadd.f32 0.0, %v966
      %v968 = vpop.f32.mrf.mxu0
      %969 = vdwg.mxu0
      %v970 = vld [vmem:[%s4] sm:$0xff]
      %v971 = vmul.f32 %v967, %v970
      %vm972 = vcmask 785408
      %v974 = vsel %vm972, %v971, 0
      %976 = vmatprep.subr.mxu0 0.0
      %977 = vmatpush1.msra.mxu0 0.0
      %978 = vmatprep.subr.mxu0 0.0
      %979 = vmatpush1.msra.mxu0 0.0
      %980 = vmatprep.subr.mxu0 0.0
      %981 = vmatpush1.msra.mxu0 0.0
      %982 = vmatprep.subr.mxu0 0.0
      %983 = vmatpush1.msra.mxu0 0.0
      %984 = vmatprep.subr.mxu0 %v888
      %985 = vmatpush1.msra.mxu0 %v887
      %986 = vmatprep.subr.mxu0 %v886
      %987 = vmatpush1.msra.mxu0 %v885
      %988 = vmatprep.subr.mxu0 %v884
      %989 = vmatpush1.msra.mxu0 %v883
      %990 = vmatprep.subr.mxu0 %v882
      %991 = vmatpush1.msra.mxu0 %v881
      %992 = vmatprep.subr.mxu0 %v880
      %993 = vmatpush1.msra.mxu0 %v879
      %994 = vmatprep.subr.mxu0 %v878
      %995 = vmatpush1.msra.mxu0 %v877
      %996 = vmatprep.subr.mxu0 %v876
      %997 = vmatpush1.msra.mxu0 %v875
      %998 = vmatprep.subr.mxu0 %v874
      %999 = vmatpush1.msra.mxu0 %v873
      %1000 = vmatprep.subr.mxu0 %v872
      %1001 = vmatpush1.msra.mxu0 %v871
      %1002 = vmatprep.subr.mxu0 %v870
      %1003 = vmatpush1.msra.mxu0 %v869
      %1004 = vmatprep.subr.mxu0 %v868
      %1005 = vmatpush1.msra.mxu0 %v867
      %1006 = vmatprep.subr.mxu0 %v866
      %1007 = vmatpush1.msra.mxu0 %v865
      %1008 = vmatprep.subr.mxu0 0.0
      %1009 = vmatpush2.msra.mxu0 0.0
      %1010 = vmatprep.subr.mxu0 0.0
      %1011 = vmatpush2.msra.mxu0 0.0
      %1012 = vmatprep.subr.mxu0 0.0
      %1013 = vmatpush2.msra.mxu0 0.0
      %1014 = vmatprep.subr.mxu0 0.0
      %1015 = vmatpush2.msra.mxu0 0.0
      %1016 = vmatprep.subr.mxu0 0.0
      %1017 = vmatpush2.msra.mxu0 0.0
      %1018 = vmatprep.subr.mxu0 0.0
      %1019 = vmatpush2.msra.mxu0 0.0
      %1020 = vmatprep.subr.mxu0 0.0
      %1021 = vmatpush2.msra.mxu0 0.0
      %1022 = vmatprep.subr.mxu0 0.0
      %1023 = vmatpush2.msra.mxu0 0.0
      %1024 = vmatprep.subr.mxu0 0.0
      %1025 = vmatpush2.msra.mxu0 0.0
      %1026 = vmatprep.subr.mxu0 0.0
      %1027 = vmatpush2.msra.mxu0 0.0
      %1028 = vmatprep.subr.mxu0 0.0
      %1029 = vmatpush2.msra.mxu0 0.0
      %1030 = vmatprep.subr.mxu0 0.0
      %1031 = vmatpush2.msra.mxu0 0.0
      %1032 = vmatprep.subr.mxu0 0.0
      %1033 = vmatpush2.msra.mxu0 0.0
      %1034 = vmatprep.subr.mxu0 0.0
      %1035 = vmatpush2.msra.mxu0 0.0
      %1036 = vmatprep.subr.mxu0 0.0
      %1037 = vmatpush2.msra.mxu0 0.0
      %1038 = vmatprep.subr.mxu0 0.0
      %1039 = vmatpush2.msra.mxu0 0.0
      %1040 = vmatprep.mubr.f32.mxu0 0.0
      %1041 = vmatmul.mubr.f32.gmra.mxu0 %v974
      %v1042 = vpop.f32.mrf.mxu0
      %v1043 = vadd.f32 0.0, %v1042
      %v1044 = vpop.f32.mrf.mxu0
      %v1045 = vadd.f32 0.0, %v1044
      %1046 = vdwg.mxu0
      %vm1047 = vcmp.lt.f32.partialorder %v1043, 0.5
      %vm1048 = vcmp.lt.f32.partialorder %v1045, 0.5
      %v1049 = vsel %vm1047, 0.0, 1.0
      %v1050 = vsel %vm1048, 0.0, 1.0
      %1051 = vst [vmem:[%s438] sm:$0xff] %v1049
      %1052 = vst [vmem:[%s438 + $0x8] sm:$0xff] %v1050
      %v1053 = vld [vmem:[%s433] sm:$0xff]
      %v1054 = vld [vmem:[%s433 + $0x8] sm:$0xff]
      %v1055 = vld [vmem:[%s433 + $0x10] sm:$0xff]
      %v1056 = vld [vmem:[%s433 + $0x18] sm:$0xff]
      %v1057 = vld [vmem:[%s433 + $0x20] sm:$0xff]
      %v1058 = vld [vmem:[%s433 + $0x28] sm:$0xff]
      %v1059 = vld [vmem:[%s8] sm:$0x77]
      %v1062 = vunpack.c.l.s4 1966171168
      %v1063 = vunpack.c.0.s8 %v1062
      %v1064 = vlaneseq
      %v1065 = vshrl.u32 %v1064, 7
      %v1066 = vsub.s32 %v1063, %v1065
      %v1067 = vrot.slane %v1059, %v1066
      %v1068 = vcombine.high %v1067, %v1067
      %v1070 = vunpack.c.l.s4 1966171168
      %v1071 = vunpack.c.0.s8 %v1070
      %v1072 = vlaneseq
      %v1073 = vshrl.u32 %v1072, 7
      %v1074 = vsub.s32 %v1071, %v1073
      %v1075 = vrot.slane %v1067, %v1074
      %v1077 = vunpack.c.l.s4 1966171168
      %v1078 = vunpack.c.0.s8 %v1077
      %v1079 = vlaneseq
      %v1080 = vshrl.u32 %v1079, 7
      %v1081 = vsub.s32 %v1078, %v1080
      %v1082 = vrot.slane %v1068, %v1081
      %v1083 = vcombine.high %v1075, %v1075
      %v1084 = vlaneseq
      %v1085 = vshrl.u32 %v1084, 7
      %v1086 = vsub.s32 0, %v1085
      %v1087 = vrot.slane %v1075, %v1086
      %v1088 = vlaneseq
      %v1089 = vshrl.u32 %v1088, 7
      %v1090 = vsub.s32 1, %v1089
      %v1091 = vrot.slane %v1075, %v1090
      %v1092 = vlaneseq
      %v1093 = vshrl.u32 %v1092, 7
      %v1094 = vsub.s32 0, %v1093
      %v1095 = vrot.slane %v1082, %v1094
      %v1096 = vlaneseq
      %v1097 = vshrl.u32 %v1096, 7
      %v1098 = vsub.s32 1, %v1097
      %v1099 = vrot.slane %v1082, %v1098
      %v1100 = vlaneseq
      %v1101 = vshrl.u32 %v1100, 7
      %v1102 = vsub.s32 0, %v1101
      %v1103 = vrot.slane %v1083, %v1102
      %v1104 = vlaneseq
      %v1105 = vshrl.u32 %v1104, 7
      %v1106 = vsub.s32 1, %v1105
      %v1107 = vrot.slane %v1083, %v1106
      %v1114 = vsub.f32 %v1053, %v1087
      %v1115 = vsub.f32 %v1054, %v1091
      %v1116 = vsub.f32 %v1055, %v1095
      %v1117 = vsub.f32 %v1056, %v1099
      %v1118 = vsub.f32 %v1057, %v1103
      %v1119 = vsub.f32 %v1058, %v1107
      %v1120 = vmul.f32 %v1049, %v1114
      %v1121 = vmul.f32 %v1050, %v1115
      %v1122 = vmul.f32 %v1049, %v1116
      %v1123 = vmul.f32 %v1050, %v1117
      %v1124 = vmul.f32 %v1049, %v1118
      %v1125 = vmul.f32 %v1050, %v1119
      %v1126 = vadd.f32 %v1087, %v1120
      %v1127 = vadd.f32 %v1091, %v1121
      %v1128 = vadd.f32 %v1095, %v1122
      %v1129 = vadd.f32 %v1099, %v1123
      %v1130 = vadd.f32 %v1103, %v1124
      %v1131 = vadd.f32 %v1107, %v1125
      %1132 = vst [vmem:[%s443] sm:$0xff] %v1126
      %1133 = vst [vmem:[%s443 + $0x8] sm:$0xff] %v1127
      %1134 = vst [vmem:[%s443 + $0x10] sm:$0xff] %v1128
      %1135 = vst [vmem:[%s443 + $0x18] sm:$0xff] %v1129
      %1136 = vst [vmem:[%s443 + $0x20] sm:$0xff] %v1130
      %1137 = vst [vmem:[%s443 + $0x28] sm:$0xff] %v1131
      %v1138 = vsub.f32 %v1053, %v1120
      %v1139 = vsub.f32 %v1054, %v1121
      %v1140 = vsub.f32 %v1055, %v1122
      %v1141 = vsub.f32 %v1056, %v1123
      %v1142 = vsub.f32 %v1057, %v1124
      %v1143 = vsub.f32 %v1058, %v1125
      %1144 = vst [vmem:[%s448] sm:$0xff] %v1138
      %1145 = vst [vmem:[%s448 + $0x8] sm:$0xff] %v1139
      %1146 = vst [vmem:[%s448 + $0x10] sm:$0xff] %v1140
      %1147 = vst [vmem:[%s448 + $0x18] sm:$0xff] %v1141
      %1148 = vst [vmem:[%s448 + $0x20] sm:$0xff] %v1142
      %1149 = vst [vmem:[%s448 + $0x28] sm:$0xff] %v1143
      %p1150 = scmp.lt.s32.totalorder %s23, 1
      %s1151 = scalar_select %p1150, %s23, 1
      %s1152 = smul.addr %s1151, 2
      %s1153 = smul.addr %s1152, 8
      %s1154 = scalar_lea.vmem %s9, %s1153
      %p1155 = scmp.lt.s32.totalorder %s23, 1
      %s1156 = scalar_select %p1155, %s23, 1
      %s1157 = smul.addr %s1156, 6
      %s1158 = smul.addr %s1157, 8
      %s1159 = scalar_lea.vmem %s10, %s1158
      %p1160 = scmp.lt.s32.totalorder %s23, 1
      %s1161 = scalar_select %p1160, %s23, 1
      %s1162 = smul.addr %s1161, 6
      %s1163 = smul.addr %s1162, 8
      %s1164 = scalar_lea.vmem %s11, %s1163
      // Predicated region
      $region57: #{my_model_forward.3} parent=55 // pred_check
        %p1165 = pneg %p245
      $region58: #{my_model_forward.3} parent=55 // pred_check_branch
        %1167 = sbr.rel (%p1165) target = $region60
      $region59: #{my_model_forward.3} parent=55 // pred_region
        _
      $region60: #{my_model_forward.3} parent=55 // pred_fallthru
        _
      // Predicated region
      $region61: #{my_model_forward.3} parent=55 // pred_check
        %p1168 = pneg %p271
      $region62: #{my_model_forward.3} parent=55 // pred_check_branch
        %1170 = sbr.rel (%p1168) target = $region64
      $region63: #{my_model_forward.3} parent=55 // pred_region
        _
      $region64: #{my_model_forward.3} parent=55 // pred_fallthru
        _
      // Predicated region
      $region65: #{my_model_forward.3} parent=55 // pred_check
        %p1171 = pneg %p297
      $region66: #{my_model_forward.3} parent=55 // pred_check_branch
        %1173 = sbr.rel (%p1171) target = $region68
      $region67: #{my_model_forward.3} parent=55 // pred_region
        _
      $region68: #{my_model_forward.3} parent=55 // pred_fallthru
        _
    $region56: #{my_model_forward.3} parent=5 // pred_fallthru
      _
    %p1174 = scmp.le.s32.totalorder 2, %s18
    // Predicated region
    $region69: #{my_model_forward.3} parent=5 // pred_check
      %p1175 = pneg %p1174
    $region70: #{my_model_forward.3} parent=5 // pred_check_branch
      %1177 = sbr.rel (%p1175) target = $region72
    $region71: #{my_model_forward.3} parent=5 // pred_region
      %s1178 = ssub.s32 %s18, 2
      // Predicated region
      $region73: #{my_model_forward.3} parent=71 // pred_check
        %p1179 = pneg %p251
      $region74: #{my_model_forward.3} parent=71 // pred_check_branch
        %1181 = sbr.rel (%p1179) target = $region76
      $region75: #{my_model_forward.3} parent=71 // pred_region
        %p1182 = scmp.lt.s32.totalorder %s24, 1
        %s1183 = scalar_select %p1182, %s24, 1
        %s1184 = smul.addr %s1183, 2
        %s1185 = smul.addr %s1184, 8
        %s1186 = scalar_lea.vmem %s9, %s1185
      $region76: #{my_model_forward.3} parent=71 // pred_fallthru
        _
      // Predicated region
      $region77: #{my_model_forward.3} parent=71 // pred_check
        %p1187 = pneg %p277
      $region78: #{my_model_forward.3} parent=71 // pred_check_branch
        %1189 = sbr.rel (%p1187) target = $region80
      $region79: #{my_model_forward.3} parent=71 // pred_region
        %p1190 = scmp.lt.s32.totalorder %s24, 1
        %s1191 = scalar_select %p1190, %s24, 1
        %s1192 = smul.addr %s1191, 6
        %s1193 = smul.addr %s1192, 8
        %s1194 = scalar_lea.vmem %s10, %s1193
      $region80: #{my_model_forward.3} parent=71 // pred_fallthru
        _
      // Predicated region
      $region81: #{my_model_forward.3} parent=71 // pred_check
        %p1195 = pneg %p303
      $region82: #{my_model_forward.3} parent=71 // pred_check_branch
        %1197 = sbr.rel (%p1195) target = $region84
      $region83: #{my_model_forward.3} parent=71 // pred_region
        %p1198 = scmp.lt.s32.totalorder %s24, 1
        %s1199 = scalar_select %p1198, %s24, 1
        %s1200 = smul.addr %s1199, 6
        %s1201 = smul.addr %s1200, 8
        %s1202 = scalar_lea.vmem %s11, %s1201
      $region84: #{my_model_forward.3} parent=71 // pred_fallthru
        _
    $region72: #{my_model_forward.3} parent=5 // pred_fallthru
      _
  $region6: #{my_model_forward.3} parent=0 // loop_footer
    %s22 = sadd.s32 1, %s18
  $region7: #{my_model_forward.3} parent=0 // loop_footer_branch
    %17 = sbr.rel target = $region3
  $region8: #{my_model_forward.3} parent=0 // loop_exit
    _

// kernel: my_model_forward.2
$region0: #{my_model_forward.2}
  #allocation0 [shape = 'u32[]', space=smem, size = 0x4, offset = 0x4, fixed_abs, tag = 'smem constant byte address 0x4 - core index']
  #allocation1 [shape = 'u32[144,128]{1,0:T(1,128)}', space=vmem, size = 0x12000, scoped, tag = 'internal scratch']
  %s0 = inlined_call_operand.vmem [shape: f32[8,64], index: 0, kind: input, shape index: {}]
  %s1 = inlined_call_operand.hbm [shape: f32[64,1024], index: 1, kind: input, shape index: {}]
  %s2 = inlined_call_operand.vmem [shape: f32[1,1024], index: 2, kind: input, shape index: {}]
  %s3 = inlined_call_operand.vmem [shape: f32[1024,256], index: 3, kind: input, shape index: {}]
  %s4 = inlined_call_operand.vmem [shape: f32[1,256], index: 4, kind: input, shape index: {}]
  %s5 = inlined_call_operand.vmem [shape: f32[256,128], index: 5, kind: input, shape index: {}]
  %s6 = inlined_call_operand.vmem [shape: f32[1,128], index: 6, kind: input, shape index: {}]
  %s7 = inlined_call_operand.vmem [shape: f32[8,128], index: 7, kind: output, shape index: {}]
  %s8 = sld [smem:[#allocation0]]
  $region42: #{my_model_forward.2} parent=0
    _
  %s10 = ssub.s32 1, %s8
  %s11 = scalar_select 0, %s10, %s8
  $region1: #{my_model_forward.2} parent=0
    #allocation2 [shape = 'u8[262144]{0}', space=vmem, size = 0x40000, scoped, tag = 'input window, operand 1, single buffered']
    #allocation3 [shape = 's32[1]{0}', space=sflag, size = 0x4, scoped, tag = 'scoped memory for my_model_forward.2']
    %12 = vsyncpa [#allocation3], 0
    // Predicated region
    $region2: #{my_model_forward.2} parent=1 // pred_check
      _
    $region3: #{my_model_forward.2} parent=1 // pred_check_branch
      %14 = sbr.rel (0) target = $region5
    $region4: #{my_model_forward.2} parent=1 // pred_region
      _
    $region5: #{my_model_forward.2} parent=1 // pred_fallthru
      _
    // Predicated region
    $region6: #{my_model_forward.2} parent=1 // pred_check
      _
    $region7: #{my_model_forward.2} parent=1 // pred_check_branch
      %16 = sbr.rel (0) target = $region9
    $region8: #{my_model_forward.2} parent=1 // pred_region
      %s18 = ssub.s32 8192, 8192
      %19 = vsyncadd [#allocation3], %s18
      %s20 = sshll.u32 [#allocation2], 4
      %s21 = int_to_ptr.vmem [resolvable:$true] %s20
      %26 = dma.hbm_to_vmem [thread:$0]  %s1, 8192, %s21, [#allocation3], 1024, 1024, 64
    $region9: #{my_model_forward.2} parent=1 // pred_fallthru
      _
    // Predicated region
    $region10: #{my_model_forward.2} parent=1 // pred_check
      _
    $region11: #{my_model_forward.2} parent=1 // pred_check_branch
      %28 = sbr.rel (0) target = $region13
    $region12: #{my_model_forward.2} parent=1 // pred_region
      _
    $region13: #{my_model_forward.2} parent=1 // pred_fallthru
      _
    // Predicated region
    $region14: #{my_model_forward.2} parent=1 // pred_check
      _
    $region15: #{my_model_forward.2} parent=1 // pred_check_branch
      %30 = sbr.rel (0) target = $region17
    $region16: #{my_model_forward.2} parent=1 // pred_region
      _
    $region17: #{my_model_forward.2} parent=1 // pred_fallthru
      _
    // Predicated region
    $region18: #{my_model_forward.2} parent=1 // pred_check
      _
    $region19: #{my_model_forward.2} parent=1 // pred_check_branch
      %32 = sbr.rel (0) target = $region21
    $region20: #{my_model_forward.2} parent=1 // pred_region
      _
    $region21: #{my_model_forward.2} parent=1 // pred_fallthru
      _
    // Predicated region
    $region22: #{my_model_forward.2} parent=1 // pred_check
      _
    $region23: #{my_model_forward.2} parent=1 // pred_check_branch
      %34 = sbr.rel (0) target = $region25
    $region24: #{my_model_forward.2} parent=1 // pred_region
      _
    $region25: #{my_model_forward.2} parent=1 // pred_fallthru
      _
    // Predicated region
    $region26: #{my_model_forward.2} parent=1 // pred_check
      _
    $region27: #{my_model_forward.2} parent=1 // pred_check_branch
      %36 = sbr.rel (0) target = $region29
    $region28: #{my_model_forward.2} parent=1 // pred_region
      _
    $region29: #{my_model_forward.2} parent=1 // pred_fallthru
      _
    // Predicated region
    $region30: #{my_model_forward.2} parent=1 // pred_check
      _
    $region31: #{my_model_forward.2} parent=1 // pred_check_branch
      %38 = sbr.rel (0) target = $region33
    $region32: #{my_model_forward.2} parent=1 // pred_region
      %39 = dma.done [#allocation3], 8192
    $region33: #{my_model_forward.2} parent=1 // pred_fallthru
      _
    %v40 = vld [vmem:[%s0] sm:$0xff]
    %v41 = vld [vmem:[#allocation2] sm:$0xff]
    %v42 = vld [vmem:[#allocation2 + $0x8] sm:$0xff]
    %v43 = vld [vmem:[#allocation2 + $0x10] sm:$0xff]
    %v44 = vld [vmem:[#allocation2 + $0x18] sm:$0xff]
    %v45 = vld [vmem:[#allocation2 + $0x20] sm:$0xff]
    %v46 = vld [vmem:[#allocation2 + $0x28] sm:$0xff]
    %v47 = vld [vmem:[#allocation2 + $0x30] sm:$0xff]
    %v48 = vld [vmem:[#allocation2 + $0x38] sm:$0xff]
    %v49 = vld [vmem:[#allocation2 + $0x40] sm:$0xff]
    %v50 = vld [vmem:[#allocation2 + $0x48] sm:$0xff]
    %v51 = vld [vmem:[#allocation2 + $0x50] sm:$0xff]
    %v52 = vld [vmem:[#allocation2 + $0x58] sm:$0xff]
    %v53 = vld [vmem:[#allocation2 + $0x60] sm:$0xff]
    %v54 = vld [vmem:[#allocation2 + $0x68] sm:$0xff]
    %v55 = vld [vmem:[#allocation2 + $0x70] sm:$0xff]
    %v56 = vld [vmem:[#allocation2 + $0x78] sm:$0xff]
    %v57 = vld [vmem:[#allocation2 + $0x80] sm:$0xff]
    %v58 = vld [vmem:[#allocation2 + $0x88] sm:$0xff]
    %v59 = vld [vmem:[#allocation2 + $0x90] sm:$0xff]
    %v60 = vld [vmem:[#allocation2 + $0x98] sm:$0xff]
    %v61 = vld [vmem:[#allocation2 + $0xa0] sm:$0xff]
    %v62 = vld [vmem:[#allocation2 + $0xa8] sm:$0xff]
    %v63 = vld [vmem:[#allocation2 + $0xb0] sm:$0xff]
    %v64 = vld [vmem:[#allocation2 + $0xb8] sm:$0xff]
    %v65 = vld [vmem:[#allocation2 + $0xc0] sm:$0xff]
    %v66 = vld [vmem:[#allocation2 + $0xc8] sm:$0xff]
    %v67 = vld [vmem:[#allocation2 + $0xd0] sm:$0xff]
    %v68 = vld [vmem:[#allocation2 + $0xd8] sm:$0xff]
    %v69 = vld [vmem:[#allocation2 + $0xe0] sm:$0xff]
    %v70 = vld [vmem:[#allocation2 + $0xe8] sm:$0xff]
    %v71 = vld [vmem:[#allocation2 + $0xf0] sm:$0xff]
    %v72 = vld [vmem:[#allocation2 + $0xf8] sm:$0xff]
    %v73 = vld [vmem:[#allocation2 + $0x100] sm:$0xff]
    %v74 = vld [vmem:[#allocation2 + $0x108] sm:$0xff]
    %v75 = vld [vmem:[#allocation2 + $0x110] sm:$0xff]
    %v76 = vld [vmem:[#allocation2 + $0x118] sm:$0xff]
    %v77 = vld [vmem:[#allocation2 + $0x120] sm:$0xff]
    %v78 = vld [vmem:[#allocation2 + $0x128] sm:$0xff]
    %v79 = vld [vmem:[#allocation2 + $0x130] sm:$0xff]
    %v80 = vld [vmem:[#allocation2 + $0x138] sm:$0xff]
    %v81 = vld [vmem:[#allocation2 + $0x140] sm:$0xff]
    %v82 = vld [vmem:[#allocation2 + $0x148] sm:$0xff]
    %v83 = vld [vmem:[#allocation2 + $0x150] sm:$0xff]
    %v84 = vld [vmem:[#allocation2 + $0x158] sm:$0xff]
    %v85 = vld [vmem:[#allocation2 + $0x160] sm:$0xff]
    %v86 = vld [vmem:[#allocation2 + $0x168] sm:$0xff]
    %v87 = vld [vmem:[#allocation2 + $0x170] sm:$0xff]
    %v88 = vld [vmem:[#allocation2 + $0x178] sm:$0xff]
    %v89 = vld [vmem:[#allocation2 + $0x180] sm:$0xff]
    %v90 = vld [vmem:[#allocation2 + $0x188] sm:$0xff]
    %v91 = vld [vmem:[#allocation2 + $0x190] sm:$0xff]
    %v92 = vld [vmem:[#allocation2 + $0x198] sm:$0xff]
    %v93 = vld [vmem:[#allocation2 + $0x1a0] sm:$0xff]
    %v94 = vld [vmem:[#allocation2 + $0x1a8] sm:$0xff]
    %v95 = vld [vmem:[#allocation2 + $0x1b0] sm:$0xff]
    %v96 = vld [vmem:[#allocation2 + $0x1b8] sm:$0xff]
    %v97 = vld [vmem:[#allocation2 + $0x1c0] sm:$0xff]
    %v98 = vld [vmem:[#allocation2 + $0x1c8] sm:$0xff]
    %v99 = vld [vmem:[#allocation2 + $0x1d0] sm:$0xff]
    %v100 = vld [vmem:[#allocation2 + $0x1d8] sm:$0xff]
    %v101 = vld [vmem:[#allocation2 + $0x1e0] sm:$0xff]
    %v102 = vld [vmem:[#allocation2 + $0x1e8] sm:$0xff]
    %v103 = vld [vmem:[#allocation2 + $0x1f0] sm:$0xff]
    %v104 = vld [vmem:[#allocation2 + $0x1f8] sm:$0xff]
    %v105 = vld [vmem:[%s2] sm:$0xff]
    %v107 = vlaneseq
    %v108 = vshrl.u32 %v107, 7
    %v109 = vsub.s32 0, %v108
    %v110 = vrot.slane %v105, %v109
    %v111 = vlaneseq
    %v112 = vshrl.u32 %v111, 7
    %v113 = vsub.s32 1, %v112
    %v114 = vrot.slane %v105, %v113
    %v115 = vlaneseq
    %v116 = vshrl.u32 %v115, 7
    %v117 = vsub.s32 2, %v116
    %v118 = vrot.slane %v105, %v117
    %v119 = vlaneseq
    %v120 = vshrl.u32 %v119, 7
    %v121 = vsub.s32 3, %v120
    %v122 = vrot.slane %v105, %v121
    %v123 = vlaneseq
    %v124 = vshrl.u32 %v123, 7
    %v125 = vsub.s32 4, %v124
    %v126 = vrot.slane %v105, %v125
    %v127 = vlaneseq
    %v128 = vshrl.u32 %v127, 7
    %v129 = vsub.s32 5, %v128
    %v130 = vrot.slane %v105, %v129
    %v131 = vlaneseq
    %v132 = vshrl.u32 %v131, 7
    %v133 = vsub.s32 6, %v132
    %v134 = vrot.slane %v105, %v133
    %v135 = vlaneseq
    %v136 = vshrl.u32 %v135, 7
    %v137 = vsub.s32 7, %v136
    %v138 = vrot.slane %v105, %v137
    %vm147 = vcmask 523264
    %v149 = vsel %vm147, %v40, 0
    %151 = vmatprep.subr.mxu0 0.0
    %152 = vmatpush1.msra.mxu0 0.0
    %153 = vmatprep.subr.mxu0 0.0
    %154 = vmatpush1.msra.mxu0 0.0
    %155 = vmatprep.subr.mxu0 0.0
    %156 = vmatpush1.msra.mxu0 0.0
    %157 = vmatprep.subr.mxu0 0.0
    %158 = vmatpush1.msra.mxu0 0.0
    %159 = vmatprep.subr.mxu0 0.0
    %160 = vmatpush1.msra.mxu0 0.0
    %161 = vmatprep.subr.mxu0 0.0
    %162 = vmatpush1.msra.mxu0 0.0
    %163 = vmatprep.subr.mxu0 0.0
    %164 = vmatpush1.msra.mxu0 0.0
    %165 = vmatprep.subr.mxu0 0.0
    %166 = vmatpush1.msra.mxu0 0.0
    %167 = vmatprep.subr.mxu0 %v98
    %168 = vmatpush1.msra.mxu0 %v97
    %169 = vmatprep.subr.mxu0 %v90
    %170 = vmatpush1.msra.mxu0 %v89
    %171 = vmatprep.subr.mxu0 %v82
    %172 = vmatpush1.msra.mxu0 %v81
    %173 = vmatprep.subr.mxu0 %v74
    %174 = vmatpush1.msra.mxu0 %v73
    %175 = vmatprep.subr.mxu0 %v66
    %176 = vmatpush1.msra.mxu0 %v65
    %177 = vmatprep.subr.mxu0 %v58
    %178 = vmatpush1.msra.mxu0 %v57
    %179 = vmatprep.subr.mxu0 %v50
    %180 = vmatpush1.msra.mxu0 %v49
    %181 = vmatprep.subr.mxu0 %v42
    %182 = vmatpush1.msra.mxu0 %v41
    %183 = vmatprep.subr.mxu0 0.0
    %184 = vmatpush2.msra.mxu0 0.0
    %185 = vmatprep.subr.mxu0 0.0
    %186 = vmatpush2.msra.mxu0 0.0
    %187 = vmatprep.subr.mxu0 0.0
    %188 = vmatpush2.msra.mxu0 0.0
    %189 = vmatprep.subr.mxu0 0.0
    %190 = vmatpush2.msra.mxu0 0.0
    %191 = vmatprep.subr.mxu0 0.0
    %192 = vmatpush2.msra.mxu0 0.0
    %193 = vmatprep.subr.mxu0 0.0
    %194 = vmatpush2.msra.mxu0 0.0
    %195 = vmatprep.subr.mxu0 0.0
    %196 = vmatpush2.msra.mxu0 0.0
    %197 = vmatprep.subr.mxu0 0.0
    %198 = vmatpush2.msra.mxu0 0.0
    %199 = vmatprep.subr.mxu0 0.0
    %200 = vmatpush2.msra.mxu0 0.0
    %201 = vmatprep.subr.mxu0 0.0
    %202 = vmatpush2.msra.mxu0 0.0
    %203 = vmatprep.subr.mxu0 0.0
    %204 = vmatpush2.msra.mxu0 0.0
    %205 = vmatprep.subr.mxu0 0.0
    %206 = vmatpush2.msra.mxu0 0.0
    %207 = vmatprep.subr.mxu0 0.0
    %208 = vmatpush2.msra.mxu0 0.0
    %209 = vmatprep.subr.mxu0 0.0
    %210 = vmatpush2.msra.mxu0 0.0
    %211 = vmatprep.subr.mxu0 0.0
    %212 = vmatpush2.msra.mxu0 0.0
    %213 = vmatprep.subr.mxu0 0.0
    %214 = vmatpush2.msra.mxu0 0.0
    %215 = vmatprep.mubr.f32.mxu0 0.0
    %216 = vmatmul.mubr.f32.gmra.mxu0 %v149
    %v217 = vpop.f32.mrf.mxu0
    %v218 = vadd.f32 %v110, %v217
    %v219 = vpop.f32.mrf.mxu0
    %v220 = vadd.f32 %v114, %v219
    %221 = vdwg.mxu0
    %222 = vmatprep.subr.mxu0 0.0
    %223 = vmatpush1.msra.mxu0 0.0
    %224 = vmatprep.subr.mxu0 0.0
    %225 = vmatpush1.msra.mxu0 0.0
    %226 = vmatprep.subr.mxu0 0.0
    %227 = vmatpush1.msra.mxu0 0.0
    %228 = vmatprep.subr.mxu0 0.0
    %229 = vmatpush1.msra.mxu0 0.0
    %230 = vmatprep.subr.mxu0 0.0
    %231 = vmatpush1.msra.mxu0 0.0
    %232 = vmatprep.subr.mxu0 0.0
    %233 = vmatpush1.msra.mxu0 0.0
    %234 = vmatprep.subr.mxu0 0.0
    %235 = vmatpush1.msra.mxu0 0.0
    %236 = vmatprep.subr.mxu0 0.0
    %237 = vmatpush1.msra.mxu0 0.0
    %238 = vmatprep.subr.mxu0 %v100
    %239 = vmatpush1.msra.mxu0 %v99
    %240 = vmatprep.subr.mxu0 %v92
    %241 = vmatpush1.msra.mxu0 %v91
    %242 = vmatprep.subr.mxu0 %v84
    %243 = vmatpush1.msra.mxu0 %v83
    %244 = vmatprep.subr.mxu0 %v76
    %245 = vmatpush1.msra.mxu0 %v75
    %246 = vmatprep.subr.mxu0 %v68
    %247 = vmatpush1.msra.mxu0 %v67
    %248 = vmatprep.subr.mxu0 %v60
    %249 = vmatpush1.msra.mxu0 %v59
    %250 = vmatprep.subr.mxu0 %v52
    %251 = vmatpush1.msra.mxu0 %v51
    %252 = vmatprep.subr.mxu0 %v44
    %253 = vmatpush1.msra.mxu0 %v43
    %254 = vmatprep.subr.mxu0 0.0
    %255 = vmatpush2.msra.mxu0 0.0
    %256 = vmatprep.subr.mxu0 0.0
    %257 = vmatpush2.msra.mxu0 0.0
    %258 = vmatprep.subr.mxu0 0.0
    %259 = vmatpush2.msra.mxu0 0.0
    %260 = vmatprep.subr.mxu0 0.0
    %261 = vmatpush2.msra.mxu0 0.0
    %262 = vmatprep.subr.mxu0 0.0
    %263 = vmatpush2.msra.mxu0 0.0
    %264 = vmatprep.subr.mxu0 0.0
    %265 = vmatpush2.msra.mxu0 0.0
    %266 = vmatprep.subr.mxu0 0.0
    %267 = vmatpush2.msra.mxu0 0.0
    %268 = vmatprep.subr.mxu0 0.0
    %269 = vmatpush2.msra.mxu0 0.0
    %270 = vmatprep.subr.mxu0 0.0
    %271 = vmatpush2.msra.mxu0 0.0
    %272 = vmatprep.subr.mxu0 0.0
    %273 = vmatpush2.msra.mxu0 0.0
    %274 = vmatprep.subr.mxu0 0.0
    %275 = vmatpush2.msra.mxu0 0.0
    %276 = vmatprep.subr.mxu0 0.0
    %277 = vmatpush2.msra.mxu0 0.0
    %278 = vmatprep.subr.mxu0 0.0
    %279 = vmatpush2.msra.mxu0 0.0
    %280 = vmatprep.subr.mxu0 0.0
    %281 = vmatpush2.msra.mxu0 0.0
    %282 = vmatprep.subr.mxu0 0.0
    %283 = vmatpush2.msra.mxu0 0.0
    %284 = vmatprep.subr.mxu0 0.0
    %285 = vmatpush2.msra.mxu0 0.0
    %286 = vmatprep.mubr.f32.mxu0 0.0
    %287 = vmatmul.mubr.f32.gmra.mxu0 %v149
    %v288 = vpop.f32.mrf.mxu0
    %v289 = vadd.f32 %v118, %v288
    %v290 = vpop.f32.mrf.mxu0
    %v291 = vadd.f32 %v122, %v290
    %292 = vdwg.mxu0
    %293 = vmatprep.subr.mxu0 0.0
    %294 = vmatpush1.msra.mxu0 0.0
    %295 = vmatprep.subr.mxu0 0.0
    %296 = vmatpush1.msra.mxu0 0.0
    %297 = vmatprep.subr.mxu0 0.0
    %298 = vmatpush1.msra.mxu0 0.0
    %299 = vmatprep.subr.mxu0 0.0
    %300 = vmatpush1.msra.mxu0 0.0
    %301 = vmatprep.subr.mxu0 0.0
    %302 = vmatpush1.msra.mxu0 0.0
    %303 = vmatprep.subr.mxu0 0.0
    %304 = vmatpush1.msra.mxu0 0.0
    %305 = vmatprep.subr.mxu0 0.0
    %306 = vmatpush1.msra.mxu0 0.0
    %307 = vmatprep.subr.mxu0 0.0
    %308 = vmatpush1.msra.mxu0 0.0
    %309 = vmatprep.subr.mxu0 %v102
    %310 = vmatpush1.msra.mxu0 %v101
    %311 = vmatprep.subr.mxu0 %v94
    %312 = vmatpush1.msra.mxu0 %v93
    %313 = vmatprep.subr.mxu0 %v86
    %314 = vmatpush1.msra.mxu0 %v85
    %315 = vmatprep.subr.mxu0 %v78
    %316 = vmatpush1.msra.mxu0 %v77
    %317 = vmatprep.subr.mxu0 %v70
    %318 = vmatpush1.msra.mxu0 %v69
    %319 = vmatprep.subr.mxu0 %v62
    %320 = vmatpush1.msra.mxu0 %v61
    %321 = vmatprep.subr.mxu0 %v54
    %322 = vmatpush1.msra.mxu0 %v53
    %323 = vmatprep.subr.mxu0 %v46
    %324 = vmatpush1.msra.mxu0 %v45
    %325 = vmatprep.subr.mxu0 0.0
    %326 = vmatpush2.msra.mxu0 0.0
    %327 = vmatprep.subr.mxu0 0.0
    %328 = vmatpush2.msra.mxu0 0.0
    %329 = vmatprep.subr.mxu0 0.0
    %330 = vmatpush2.msra.mxu0 0.0
    %331 = vmatprep.subr.mxu0 0.0
    %332 = vmatpush2.msra.mxu0 0.0
    %333 = vmatprep.subr.mxu0 0.0
    %334 = vmatpush2.msra.mxu0 0.0
    %335 = vmatprep.subr.mxu0 0.0
    %336 = vmatpush2.msra.mxu0 0.0
    %337 = vmatprep.subr.mxu0 0.0
    %338 = vmatpush2.msra.mxu0 0.0
    %339 = vmatprep.subr.mxu0 0.0
    %340 = vmatpush2.msra.mxu0 0.0
    %341 = vmatprep.subr.mxu0 0.0
    %342 = vmatpush2.msra.mxu0 0.0
    %343 = vmatprep.subr.mxu0 0.0
    %344 = vmatpush2.msra.mxu0 0.0
    %345 = vmatprep.subr.mxu0 0.0
    %346 = vmatpush2.msra.mxu0 0.0
    %347 = vmatprep.subr.mxu0 0.0
    %348 = vmatpush2.msra.mxu0 0.0
    %349 = vmatprep.subr.mxu0 0.0
    %350 = vmatpush2.msra.mxu0 0.0
    %351 = vmatprep.subr.mxu0 0.0
    %352 = vmatpush2.msra.mxu0 0.0
    %353 = vmatprep.subr.mxu0 0.0
    %354 = vmatpush2.msra.mxu0 0.0
    %355 = vmatprep.subr.mxu0 0.0
    %356 = vmatpush2.msra.mxu0 0.0
    %357 = vmatprep.mubr.f32.mxu0 0.0
    %358 = vmatmul.mubr.f32.gmra.mxu0 %v149
    %v359 = vpop.f32.mrf.mxu0
    %v360 = vadd.f32 %v126, %v359
    %v361 = vpop.f32.mrf.mxu0
    %v362 = vadd.f32 %v130, %v361
    %363 = vdwg.mxu0
    %364 = vmatprep.subr.mxu0 0.0
    %365 = vmatpush1.msra.mxu0 0.0
    %366 = vmatprep.subr.mxu0 0.0
    %367 = vmatpush1.msra.mxu0 0.0
    %368 = vmatprep.subr.mxu0 0.0
    %369 = vmatpush1.msra.mxu0 0.0
    %370 = vmatprep.subr.mxu0 0.0
    %371 = vmatpush1.msra.mxu0 0.0
    %372 = vmatprep.subr.mxu0 0.0
    %373 = vmatpush1.msra.mxu0 0.0
    %374 = vmatprep.subr.mxu0 0.0
    %375 = vmatpush1.msra.mxu0 0.0
    %376 = vmatprep.subr.mxu0 0.0
    %377 = vmatpush1.msra.mxu0 0.0
    %378 = vmatprep.subr.mxu0 0.0
    %379 = vmatpush1.msra.mxu0 0.0
    %380 = vmatprep.subr.mxu0 %v104
    %381 = vmatpush1.msra.mxu0 %v103
    %382 = vmatprep.subr.mxu0 %v96
    %383 = vmatpush1.msra.mxu0 %v95
    %384 = vmatprep.subr.mxu0 %v88
    %385 = vmatpush1.msra.mxu0 %v87
    %386 = vmatprep.subr.mxu0 %v80
    %387 = vmatpush1.msra.mxu0 %v79
    %388 = vmatprep.subr.mxu0 %v72
    %389 = vmatpush1.msra.mxu0 %v71
    %390 = vmatprep.subr.mxu0 %v64
    %391 = vmatpush1.msra.mxu0 %v63
    %392 = vmatprep.subr.mxu0 %v56
    %393 = vmatpush1.msra.mxu0 %v55
    %394 = vmatprep.subr.mxu0 %v48
    %395 = vmatpush1.msra.mxu0 %v47
    %396 = vmatprep.subr.mxu0 0.0
    %397 = vmatpush2.msra.mxu0 0.0
    %398 = vmatprep.subr.mxu0 0.0
    %399 = vmatpush2.msra.mxu0 0.0
    %400 = vmatprep.subr.mxu0 0.0
    %401 = vmatpush2.msra.mxu0 0.0
    %402 = vmatprep.subr.mxu0 0.0
    %403 = vmatpush2.msra.mxu0 0.0
    %404 = vmatprep.subr.mxu0 0.0
    %405 = vmatpush2.msra.mxu0 0.0
    %406 = vmatprep.subr.mxu0 0.0
    %407 = vmatpush2.msra.mxu0 0.0
    %408 = vmatprep.subr.mxu0 0.0
    %409 = vmatpush2.msra.mxu0 0.0
    %410 = vmatprep.subr.mxu0 0.0
    %411 = vmatpush2.msra.mxu0 0.0
    %412 = vmatprep.subr.mxu0 0.0
    %413 = vmatpush2.msra.mxu0 0.0
    %414 = vmatprep.subr.mxu0 0.0
    %415 = vmatpush2.msra.mxu0 0.0
    %416 = vmatprep.subr.mxu0 0.0
    %417 = vmatpush2.msra.mxu0 0.0
    %418 = vmatprep.subr.mxu0 0.0
    %419 = vmatpush2.msra.mxu0 0.0
    %420 = vmatprep.subr.mxu0 0.0
    %421 = vmatpush2.msra.mxu0 0.0
    %422 = vmatprep.subr.mxu0 0.0
    %423 = vmatpush2.msra.mxu0 0.0
    %424 = vmatprep.subr.mxu0 0.0
    %425 = vmatpush2.msra.mxu0 0.0
    %426 = vmatprep.subr.mxu0 0.0
    %427 = vmatpush2.msra.mxu0 0.0
    %428 = vmatprep.mubr.f32.mxu0 0.0
    %429 = vmatmul.mubr.f32.gmra.mxu0 %v149
    %v430 = vpop.f32.mrf.mxu0
    %v431 = vadd.f32 %v134, %v430
    %v432 = vpop.f32.mrf.mxu0
    %v433 = vadd.f32 %v138, %v432
    %434 = vdwg.mxu0
    %v435 = vmax.f32 %v218, 0.0
    %v436 = vmax.f32 %v220, 0.0
    %v437 = vmax.f32 %v289, 0.0
    %v438 = vmax.f32 %v291, 0.0
    %v439 = vmax.f32 %v360, 0.0
    %v440 = vmax.f32 %v362, 0.0
    %v441 = vmax.f32 %v431, 0.0
    %v442 = vmax.f32 %v433, 0.0
    %v443 = vld [vmem:[%s3] sm:$0xff]
    %v444 = vld [vmem:[%s3 + $0x8] sm:$0xff]
    %v445 = vld [vmem:[%s3 + $0x10] sm:$0xff]
    %v446 = vld [vmem:[%s3 + $0x18] sm:$0xff]
    %v447 = vld [vmem:[%s3 + $0x20] sm:$0xff]
    %v448 = vld [vmem:[%s3 + $0x28] sm:$0xff]
    %v449 = vld [vmem:[%s3 + $0x30] sm:$0xff]
    %v450 = vld [vmem:[%s3 + $0x38] sm:$0xff]
    %v451 = vld [vmem:[%s3 + $0x40] sm:$0xff]
    %v452 = vld [vmem:[%s3 + $0x48] sm:$0xff]
    %v453 = vld [vmem:[%s3 + $0x50] sm:$0xff]
    %v454 = vld [vmem:[%s3 + $0x58] sm:$0xff]
    %v455 = vld [vmem:[%s3 + $0x60] sm:$0xff]
    %v456 = vld [vmem:[%s3 + $0x68] sm:$0xff]
    %v457 = vld [vmem:[%s3 + $0x70] sm:$0xff]
    %v458 = vld [vmem:[%s3 + $0x78] sm:$0xff]
    %v459 = vld [vmem:[%s3 + $0x80] sm:$0xff]
    %v460 = vld [vmem:[%s3 + $0x88] sm:$0xff]
    %v461 = vld [vmem:[%s3 + $0x90] sm:$0xff]
    %v462 = vld [vmem:[%s3 + $0x98] sm:$0xff]
    %v463 = vld [vmem:[%s3 + $0xa0] sm:$0xff]
    %v464 = vld [vmem:[%s3 + $0xa8] sm:$0xff]
    %v465 = vld [vmem:[%s3 + $0xb0] sm:$0xff]
    %v466 = vld [vmem:[%s3 + $0xb8] sm:$0xff]
    %v467 = vld [vmem:[%s3 + $0xc0] sm:$0xff]
    %v468 = vld [vmem:[%s3 + $0xc8] sm:$0xff]
    %v469 = vld [vmem:[%s3 + $0xd0] sm:$0xff]
    %v470 = vld [vmem:[%s3 + $0xd8] sm:$0xff]
    %v471 = vld [vmem:[%s3 + $0xe0] sm:$0xff]
    %v472 = vld [vmem:[%s3 + $0xe8] sm:$0xff]
    %v473 = vld [vmem:[%s3 + $0xf0] sm:$0xff]
    %v474 = vld [vmem:[%s3 + $0xf8] sm:$0xff]
    %v475 = vld [vmem:[%s3 + $0x100] sm:$0xff]
    %v476 = vld [vmem:[%s3 + $0x108] sm:$0xff]
    %v477 = vld [vmem:[%s3 + $0x110] sm:$0xff]
    %v478 = vld [vmem:[%s3 + $0x118] sm:$0xff]
    %v479 = vld [vmem:[%s3 + $0x120] sm:$0xff]
    %v480 = vld [vmem:[%s3 + $0x128] sm:$0xff]
    %v481 = vld [vmem:[%s3 + $0x130] sm:$0xff]
    %v482 = vld [vmem:[%s3 + $0x138] sm:$0xff]
    %v483 = vld [vmem:[%s3 + $0x140] sm:$0xff]
    %v484 = vld [vmem:[%s3 + $0x148] sm:$0xff]
    %v485 = vld [vmem:[%s3 + $0x150] sm:$0xff]
    %v486 = vld [vmem:[%s3 + $0x158] sm:$0xff]
    %v487 = vld [vmem:[%s3 + $0x160] sm:$0xff]
    %v488 = vld [vmem:[%s3 + $0x168] sm:$0xff]
    %v489 = vld [vmem:[%s3 + $0x170] sm:$0xff]
    %v490 = vld [vmem:[%s3 + $0x178] sm:$0xff]
    %v491 = vld [vmem:[%s3 + $0x180] sm:$0xff]
    %v492 = vld [vmem:[%s3 + $0x188] sm:$0xff]
    %v493 = vld [vmem:[%s3 + $0x190] sm:$0xff]
    %v494 = vld [vmem:[%s3 + $0x198] sm:$0xff]
    %v495 = vld [vmem:[%s3 + $0x1a0] sm:$0xff]
    %v496 = vld [vmem:[%s3 + $0x1a8] sm:$0xff]
    %v497 = vld [vmem:[%s3 + $0x1b0] sm:$0xff]
    %v498 = vld [vmem:[%s3 + $0x1b8] sm:$0xff]
    %v499 = vld [vmem:[%s3 + $0x1c0] sm:$0xff]
    %v500 = vld [vmem:[%s3 + $0x1c8] sm:$0xff]
    %v501 = vld [vmem:[%s3 + $0x1d0] sm:$0xff]
    %v502 = vld [vmem:[%s3 + $0x1d8] sm:$0xff]
    %v503 = vld [vmem:[%s3 + $0x1e0] sm:$0xff]
    %v504 = vld [vmem:[%s3 + $0x1e8] sm:$0xff]
    %v505 = vld [vmem:[%s3 + $0x1f0] sm:$0xff]
    %v506 = vld [vmem:[%s3 + $0x1f8] sm:$0xff]
    %v507 = vld [vmem:[%s3 + $0x200] sm:$0xff]
    %v508 = vld [vmem:[%s3 + $0x208] sm:$0xff]
    %v509 = vld [vmem:[%s3 + $0x210] sm:$0xff]
    %v510 = vld [vmem:[%s3 + $0x218] sm:$0xff]
    %v511 = vld [vmem:[%s3 + $0x220] sm:$0xff]
    %v512 = vld [vmem:[%s3 + $0x228] sm:$0xff]
    %v513 = vld [vmem:[%s3 + $0x230] sm:$0xff]
    %v514 = vld [vmem:[%s3 + $0x238] sm:$0xff]
    %v515 = vld [vmem:[%s3 + $0x240] sm:$0xff]
    %v516 = vld [vmem:[%s3 + $0x248] sm:$0xff]
    %v517 = vld [vmem:[%s3 + $0x250] sm:$0xff]
    %v518 = vld [vmem:[%s3 + $0x258] sm:$0xff]
    %v519 = vld [vmem:[%s3 + $0x260] sm:$0xff]
    %v520 = vld [vmem:[%s3 + $0x268] sm:$0xff]
    %v521 = vld [vmem:[%s3 + $0x270] sm:$0xff]
    %v522 = vld [vmem:[%s3 + $0x278] sm:$0xff]
    %v523 = vld [vmem:[%s3 + $0x280] sm:$0xff]
    %v524 = vld [vmem:[%s3 + $0x288] sm:$0xff]
    %v525 = vld [vmem:[%s3 + $0x290] sm:$0xff]
    %v526 = vld [vmem:[%s3 + $0x298] sm:$0xff]
    %v527 = vld [vmem:[%s3 + $0x2a0] sm:$0xff]
    %v528 = vld [vmem:[%s3 + $0x2a8] sm:$0xff]
    %v529 = vld [vmem:[%s3 + $0x2b0] sm:$0xff]
    %v530 = vld [vmem:[%s3 + $0x2b8] sm:$0xff]
    %v531 = vld [vmem:[%s3 + $0x2c0] sm:$0xff]
    %v532 = vld [vmem:[%s3 + $0x2c8] sm:$0xff]
    %v533 = vld [vmem:[%s3 + $0x2d0] sm:$0xff]
    %v534 = vld [vmem:[%s3 + $0x2d8] sm:$0xff]
    %v535 = vld [vmem:[%s3 + $0x2e0] sm:$0xff]
    %v536 = vld [vmem:[%s3 + $0x2e8] sm:$0xff]
    %v537 = vld [vmem:[%s3 + $0x2f0] sm:$0xff]
    %v538 = vld [vmem:[%s3 + $0x2f8] sm:$0xff]
    %v539 = vld [vmem:[%s3 + $0x300] sm:$0xff]
    %v540 = vld [vmem:[%s3 + $0x308] sm:$0xff]
    %v541 = vld [vmem:[%s3 + $0x310] sm:$0xff]
    %v542 = vld [vmem:[%s3 + $0x318] sm:$0xff]
    %v543 = vld [vmem:[%s3 + $0x320] sm:$0xff]
    %v544 = vld [vmem:[%s3 + $0x328] sm:$0xff]
    %v545 = vld [vmem:[%s3 + $0x330] sm:$0xff]
    %v546 = vld [vmem:[%s3 + $0x338] sm:$0xff]
    %v547 = vld [vmem:[%s3 + $0x340] sm:$0xff]
    %v548 = vld [vmem:[%s3 + $0x348] sm:$0xff]
    %v549 = vld [vmem:[%s3 + $0x350] sm:$0xff]
    %v550 = vld [vmem:[%s3 + $0x358] sm:$0xff]
    %v551 = vld [vmem:[%s3 + $0x360] sm:$0xff]
    %v552 = vld [vmem:[%s3 + $0x368] sm:$0xff]
    %v553 = vld [vmem:[%s3 + $0x370] sm:$0xff]
    %v554 = vld [vmem:[%s3 + $0x378] sm:$0xff]
    %v555 = vld [vmem:[%s3 + $0x380] sm:$0xff]
    %v556 = vld [vmem:[%s3 + $0x388] sm:$0xff]
    %v557 = vld [vmem:[%s3 + $0x390] sm:$0xff]
    %v558 = vld [vmem:[%s3 + $0x398] sm:$0xff]
    %v559 = vld [vmem:[%s3 + $0x3a0] sm:$0xff]
    %v560 = vld [vmem:[%s3 + $0x3a8] sm:$0xff]
    %v561 = vld [vmem:[%s3 + $0x3b0] sm:$0xff]
    %v562 = vld [vmem:[%s3 + $0x3b8] sm:$0xff]
    %v563 = vld [vmem:[%s3 + $0x3c0] sm:$0xff]
    %v564 = vld [vmem:[%s3 + $0x3c8] sm:$0xff]
    %v565 = vld [vmem:[%s3 + $0x3d0] sm:$0xff]
    %v566 = vld [vmem:[%s3 + $0x3d8] sm:$0xff]
    %v567 = vld [vmem:[%s3 + $0x3e0] sm:$0xff]
    %v568 = vld [vmem:[%s3 + $0x3e8] sm:$0xff]
    %v569 = vld [vmem:[%s3 + $0x3f0] sm:$0xff]
    %v570 = vld [vmem:[%s3 + $0x3f8] sm:$0xff]
    %v571 = vld [vmem:[%s3 + $0x400] sm:$0xff]
    %v572 = vld [vmem:[%s3 + $0x408] sm:$0xff]
    %v573 = vld [vmem:[%s3 + $0x410] sm:$0xff]
    %v574 = vld [vmem:[%s3 + $0x418] sm:$0xff]
    %v575 = vld [vmem:[%s3 + $0x420] sm:$0xff]
    %v576 = vld [vmem:[%s3 + $0x428] sm:$0xff]
    %v577 = vld [vmem:[%s3 + $0x430] sm:$0xff]
    %v578 = vld [vmem:[%s3 + $0x438] sm:$0xff]
    %v579 = vld [vmem:[%s3 + $0x440] sm:$0xff]
    %v580 = vld [vmem:[%s3 + $0x448] sm:$0xff]
    %v581 = vld [vmem:[%s3 + $0x450] sm:$0xff]
    %v582 = vld [vmem:[%s3 + $0x458] sm:$0xff]
    %v583 = vld [vmem:[%s3 + $0x460] sm:$0xff]
    %v584 = vld [vmem:[%s3 + $0x468] sm:$0xff]
    %v585 = vld [vmem:[%s3 + $0x470] sm:$0xff]
    %v586 = vld [vmem:[%s3 + $0x478] sm:$0xff]
    %v587 = vld [vmem:[%s3 + $0x480] sm:$0xff]
    %v588 = vld [vmem:[%s3 + $0x488] sm:$0xff]
    %v589 = vld [vmem:[%s3 + $0x490] sm:$0xff]
    %v590 = vld [vmem:[%s3 + $0x498] sm:$0xff]
    %v591 = vld [vmem:[%s3 + $0x4a0] sm:$0xff]
    %v592 = vld [vmem:[%s3 + $0x4a8] sm:$0xff]
    %v593 = vld [vmem:[%s3 + $0x4b0] sm:$0xff]
    %v594 = vld [vmem:[%s3 + $0x4b8] sm:$0xff]
    %v595 = vld [vmem:[%s3 + $0x4c0] sm:$0xff]
    %v596 = vld [vmem:[%s3 + $0x4c8] sm:$0xff]
    %v597 = vld [vmem:[%s3 + $0x4d0] sm:$0xff]
    %v598 = vld [vmem:[%s3 + $0x4d8] sm:$0xff]
    %v599 = vld [vmem:[%s3 + $0x4e0] sm:$0xff]
    %v600 = vld [vmem:[%s3 + $0x4e8] sm:$0xff]
    %v601 = vld [vmem:[%s3 + $0x4f0] sm:$0xff]
    %v602 = vld [vmem:[%s3 + $0x4f8] sm:$0xff]
    %v603 = vld [vmem:[%s3 + $0x500] sm:$0xff]
    %v604 = vld [vmem:[%s3 + $0x508] sm:$0xff]
    %v605 = vld [vmem:[%s3 + $0x510] sm:$0xff]
    %v606 = vld [vmem:[%s3 + $0x518] sm:$0xff]
    %v607 = vld [vmem:[%s3 + $0x520] sm:$0xff]
    %v608 = vld [vmem:[%s3 + $0x528] sm:$0xff]
    %v609 = vld [vmem:[%s3 + $0x530] sm:$0xff]
    %v610 = vld [vmem:[%s3 + $0x538] sm:$0xff]
    %v611 = vld [vmem:[%s3 + $0x540] sm:$0xff]
    %v612 = vld [vmem:[%s3 + $0x548] sm:$0xff]
    %v613 = vld [vmem:[%s3 + $0x550] sm:$0xff]
    %v614 = vld [vmem:[%s3 + $0x558] sm:$0xff]
    %v615 = vld [vmem:[%s3 + $0x560] sm:$0xff]
    %v616 = vld [vmem:[%s3 + $0x568] sm:$0xff]
    %v617 = vld [vmem:[%s3 + $0x570] sm:$0xff]
    %v618 = vld [vmem:[%s3 + $0x578] sm:$0xff]
    %v619 = vld [vmem:[%s3 + $0x580] sm:$0xff]
    %v620 = vld [vmem:[%s3 + $0x588] sm:$0xff]
    %v621 = vld [vmem:[%s3 + $0x590] sm:$0xff]
    %v622 = vld [vmem:[%s3 + $0x598] sm:$0xff]
    %v623 = vld [vmem:[%s3 + $0x5a0] sm:$0xff]
    %v624 = vld [vmem:[%s3 + $0x5a8] sm:$0xff]
    %v625 = vld [vmem:[%s3 + $0x5b0] sm:$0xff]
    %v626 = vld [vmem:[%s3 + $0x5b8] sm:$0xff]
    %v627 = vld [vmem:[%s3 + $0x5c0] sm:$0xff]
    %v628 = vld [vmem:[%s3 + $0x5c8] sm:$0xff]
    %v629 = vld [vmem:[%s3 + $0x5d0] sm:$0xff]
    %v630 = vld [vmem:[%s3 + $0x5d8] sm:$0xff]
    %v631 = vld [vmem:[%s3 + $0x5e0] sm:$0xff]
    %v632 = vld [vmem:[%s3 + $0x5e8] sm:$0xff]
    %v633 = vld [vmem:[%s3 + $0x5f0] sm:$0xff]
    %v634 = vld [vmem:[%s3 + $0x5f8] sm:$0xff]
    %v635 = vld [vmem:[%s3 + $0x600] sm:$0xff]
    %v636 = vld [vmem:[%s3 + $0x608] sm:$0xff]
    %v637 = vld [vmem:[%s3 + $0x610] sm:$0xff]
    %v638 = vld [vmem:[%s3 + $0x618] sm:$0xff]
    %v639 = vld [vmem:[%s3 + $0x620] sm:$0xff]
    %v640 = vld [vmem:[%s3 + $0x628] sm:$0xff]
    %v641 = vld [vmem:[%s3 + $0x630] sm:$0xff]
    %v642 = vld [vmem:[%s3 + $0x638] sm:$0xff]
    %v643 = vld [vmem:[%s3 + $0x640] sm:$0xff]
    %v644 = vld [vmem:[%s3 + $0x648] sm:$0xff]
    %v645 = vld [vmem:[%s3 + $0x650] sm:$0xff]
    %v646 = vld [vmem:[%s3 + $0x658] sm:$0xff]
    %v647 = vld [vmem:[%s3 + $0x660] sm:$0xff]
    %v648 = vld [vmem:[%s3 + $0x668] sm:$0xff]
    %v649 = vld [vmem:[%s3 + $0x670] sm:$0xff]
    %v650 = vld [vmem:[%s3 + $0x678] sm:$0xff]
    %v651 = vld [vmem:[%s3 + $0x680] sm:$0xff]
    %v652 = vld [vmem:[%s3 + $0x688] sm:$0xff]
    %v653 = vld [vmem:[%s3 + $0x690] sm:$0xff]
    %v654 = vld [vmem:[%s3 + $0x698] sm:$0xff]
    %v655 = vld [vmem:[%s3 + $0x6a0] sm:$0xff]
    %v656 = vld [vmem:[%s3 + $0x6a8] sm:$0xff]
    %v657 = vld [vmem:[%s3 + $0x6b0] sm:$0xff]
    %v658 = vld [vmem:[%s3 + $0x6b8] sm:$0xff]
    %v659 = vld [vmem:[%s3 + $0x6c0] sm:$0xff]
    %v660 = vld [vmem:[%s3 + $0x6c8] sm:$0xff]
    %v661 = vld [vmem:[%s3 + $0x6d0] sm:$0xff]
    %v662 = vld [vmem:[%s3 + $0x6d8] sm:$0xff]
    %v663 = vld [vmem:[%s3 + $0x6e0] sm:$0xff]
    %v664 = vld [vmem:[%s3 + $0x6e8] sm:$0xff]
    %v665 = vld [vmem:[%s3 + $0x6f0] sm:$0xff]
    %v666 = vld [vmem:[%s3 + $0x6f8] sm:$0xff]
    %v667 = vld [vmem:[%s3 + $0x700] sm:$0xff]
    %v668 = vld [vmem:[%s3 + $0x708] sm:$0xff]
    %v669 = vld [vmem:[%s3 + $0x710] sm:$0xff]
    %v670 = vld [vmem:[%s3 + $0x718] sm:$0xff]
    %v671 = vld [vmem:[%s3 + $0x720] sm:$0xff]
    %v672 = vld [vmem:[%s3 + $0x728] sm:$0xff]
    %v673 = vld [vmem:[%s3 + $0x730] sm:$0xff]
    %v674 = vld [vmem:[%s3 + $0x738] sm:$0xff]
    %v675 = vld [vmem:[%s3 + $0x740] sm:$0xff]
    %v676 = vld [vmem:[%s3 + $0x748] sm:$0xff]
    %v677 = vld [vmem:[%s3 + $0x750] sm:$0xff]
    %v678 = vld [vmem:[%s3 + $0x758] sm:$0xff]
    %v679 = vld [vmem:[%s3 + $0x760] sm:$0xff]
    %v680 = vld [vmem:[%s3 + $0x768] sm:$0xff]
    %v681 = vld [vmem:[%s3 + $0x770] sm:$0xff]
    %v682 = vld [vmem:[%s3 + $0x778] sm:$0xff]
    %v683 = vld [vmem:[%s3 + $0x780] sm:$0xff]
    %v684 = vld [vmem:[%s3 + $0x788] sm:$0xff]
    %v685 = vld [vmem:[%s3 + $0x790] sm:$0xff]
    %v686 = vld [vmem:[%s3 + $0x798] sm:$0xff]
    %v687 = vld [vmem:[%s3 + $0x7a0] sm:$0xff]
    %v688 = vld [vmem:[%s3 + $0x7a8] sm:$0xff]
    %v689 = vld [vmem:[%s3 + $0x7b0] sm:$0xff]
    %v690 = vld [vmem:[%s3 + $0x7b8] sm:$0xff]
    %v691 = vld [vmem:[%s3 + $0x7c0] sm:$0xff]
    %v692 = vld [vmem:[%s3 + $0x7c8] sm:$0xff]
    %v693 = vld [vmem:[%s3 + $0x7d0] sm:$0xff]
    %v694 = vld [vmem:[%s3 + $0x7d8] sm:$0xff]
    %v695 = vld [vmem:[%s3 + $0x7e0] sm:$0xff]
    %v696 = vld [vmem:[%s3 + $0x7e8] sm:$0xff]
    %v697 = vld [vmem:[%s3 + $0x7f0] sm:$0xff]
    %v698 = vld [vmem:[%s3 + $0x7f8] sm:$0xff]
    %v699 = vld [vmem:[%s4] sm:$0x3]
    %v701 = vlaneseq
    %v702 = vshrl.u32 %v701, 7
    %v703 = vsub.s32 0, %v702
    %v704 = vrot.slane %v699, %v703
    %v705 = vlaneseq
    %v706 = vshrl.u32 %v705, 7
    %v707 = vsub.s32 1, %v706
    %v708 = vrot.slane %v699, %v707
    %711 = vmatprep.subr.mxu0 %v474
    %712 = vmatpush1.msra.mxu0 %v473
    %713 = vmatprep.subr.mxu0 %v472
    %714 = vmatpush1.msra.mxu0 %v471
    %715 = vmatprep.subr.mxu0 %v470
    %716 = vmatpush1.msra.mxu0 %v469
    %717 = vmatprep.subr.mxu0 %v468
    %718 = vmatpush1.msra.mxu0 %v467
    %719 = vmatprep.subr.mxu0 %v466
    %720 = vmatpush1.msra.mxu0 %v465
    %721 = vmatprep.subr.mxu0 %v464
    %722 = vmatpush1.msra.mxu0 %v463
    %723 = vmatprep.subr.mxu0 %v462
    %724 = vmatpush1.msra.mxu0 %v461
    %725 = vmatprep.subr.mxu0 %v460
    %726 = vmatpush1.msra.mxu0 %v459
    %727 = vmatprep.subr.mxu0 %v458
    %728 = vmatpush1.msra.mxu0 %v457
    %729 = vmatprep.subr.mxu0 %v456
    %730 = vmatpush1.msra.mxu0 %v455
    %731 = vmatprep.subr.mxu0 %v454
    %732 = vmatpush1.msra.mxu0 %v453
    %733 = vmatprep.subr.mxu0 %v452
    %734 = vmatpush1.msra.mxu0 %v451
    %735 = vmatprep.subr.mxu0 %v450
    %736 = vmatpush1.msra.mxu0 %v449
    %737 = vmatprep.subr.mxu0 %v448
    %738 = vmatpush1.msra.mxu0 %v447
    %739 = vmatprep.subr.mxu0 %v446
    %740 = vmatpush1.msra.mxu0 %v445
    %741 = vmatprep.subr.mxu0 %v444
    %742 = vmatpush1.msra.mxu0 %v443
    %743 = vmatprep.subr.mxu0 %v506
    %744 = vmatpush2.msra.mxu0 %v505
    %745 = vmatprep.subr.mxu0 %v504
    %746 = vmatpush2.msra.mxu0 %v503
    %747 = vmatprep.subr.mxu0 %v502
    %748 = vmatpush2.msra.mxu0 %v501
    %749 = vmatprep.subr.mxu0 %v500
    %750 = vmatpush2.msra.mxu0 %v499
    %751 = vmatprep.subr.mxu0 %v498
    %752 = vmatpush2.msra.mxu0 %v497
    %753 = vmatprep.subr.mxu0 %v496
    %754 = vmatpush2.msra.mxu0 %v495
    %755 = vmatprep.subr.mxu0 %v494
    %756 = vmatpush2.msra.mxu0 %v493
    %757 = vmatprep.subr.mxu0 %v492
    %758 = vmatpush2.msra.mxu0 %v491
    %759 = vmatprep.subr.mxu0 %v490
    %760 = vmatpush2.msra.mxu0 %v489
    %761 = vmatprep.subr.mxu0 %v488
    %762 = vmatpush2.msra.mxu0 %v487
    %763 = vmatprep.subr.mxu0 %v486
    %764 = vmatpush2.msra.mxu0 %v485
    %765 = vmatprep.subr.mxu0 %v484
    %766 = vmatpush2.msra.mxu0 %v483
    %767 = vmatprep.subr.mxu0 %v482
    %768 = vmatpush2.msra.mxu0 %v481
    %769 = vmatprep.subr.mxu0 %v480
    %770 = vmatpush2.msra.mxu0 %v479
    %771 = vmatprep.subr.mxu0 %v478
    %772 = vmatpush2.msra.mxu0 %v477
    %773 = vmatprep.subr.mxu0 %v476
    %774 = vmatpush2.msra.mxu0 %v475
    %775 = vmatprep.mubr.f32.mxu0 %v436
    %776 = vmatmul.mubr.f32.gmra.mxu0 %v435
    %v777 = vpop.f32.mrf.mxu0
    %v778 = vadd.f32 %v704, %v777
    %v779 = vpop.f32.mrf.mxu0
    %v780 = vadd.f32 %v708, %v779
    %781 = vdwg.mxu0
    %782 = vmatprep.subr.mxu0 %v538
    %783 = vmatpush1.msra.mxu0 %v537
    %784 = vmatprep.subr.mxu0 %v536
    %785 = vmatpush1.msra.mxu0 %v535
    %786 = vmatprep.subr.mxu0 %v534
    %787 = vmatpush1.msra.mxu0 %v533
    %788 = vmatprep.subr.mxu0 %v532
    %789 = vmatpush1.msra.mxu0 %v531
    %790 = vmatprep.subr.mxu0 %v530
    %791 = vmatpush1.msra.mxu0 %v529
    %792 = vmatprep.subr.mxu0 %v528
    %793 = vmatpush1.msra.mxu0 %v527
    %794 = vmatprep.subr.mxu0 %v526
    %795 = vmatpush1.msra.mxu0 %v525
    %796 = vmatprep.subr.mxu0 %v524
    %797 = vmatpush1.msra.mxu0 %v523
    %798 = vmatprep.subr.mxu0 %v522
    %799 = vmatpush1.msra.mxu0 %v521
    %800 = vmatprep.subr.mxu0 %v520
    %801 = vmatpush1.msra.mxu0 %v519
    %802 = vmatprep.subr.mxu0 %v518
    %803 = vmatpush1.msra.mxu0 %v517
    %804 = vmatprep.subr.mxu0 %v516
    %805 = vmatpush1.msra.mxu0 %v515
    %806 = vmatprep.subr.mxu0 %v514
    %807 = vmatpush1.msra.mxu0 %v513
    %808 = vmatprep.subr.mxu0 %v512
    %809 = vmatpush1.msra.mxu0 %v511
    %810 = vmatprep.subr.mxu0 %v510
    %811 = vmatpush1.msra.mxu0 %v509
    %812 = vmatprep.subr.mxu0 %v508
    %813 = vmatpush1.msra.mxu0 %v507
    %814 = vmatprep.subr.mxu0 %v570
    %815 = vmatpush2.msra.mxu0 %v569
    %816 = vmatprep.subr.mxu0 %v568
    %817 = vmatpush2.msra.mxu0 %v567
    %818 = vmatprep.subr.mxu0 %v566
    %819 = vmatpush2.msra.mxu0 %v565
    %820 = vmatprep.subr.mxu0 %v564
    %821 = vmatpush2.msra.mxu0 %v563
    %822 = vmatprep.subr.mxu0 %v562
    %823 = vmatpush2.msra.mxu0 %v561
    %824 = vmatprep.subr.mxu0 %v560
    %825 = vmatpush2.msra.mxu0 %v559
    %826 = vmatprep.subr.mxu0 %v558
    %827 = vmatpush2.msra.mxu0 %v557
    %828 = vmatprep.subr.mxu0 %v556
    %829 = vmatpush2.msra.mxu0 %v555
    %830 = vmatprep.subr.mxu0 %v554
    %831 = vmatpush2.msra.mxu0 %v553
    %832 = vmatprep.subr.mxu0 %v552
    %833 = vmatpush2.msra.mxu0 %v551
    %834 = vmatprep.subr.mxu0 %v550
    %835 = vmatpush2.msra.mxu0 %v549
    %836 = vmatprep.subr.mxu0 %v548
    %837 = vmatpush2.msra.mxu0 %v547
    %838 = vmatprep.subr.mxu0 %v546
    %839 = vmatpush2.msra.mxu0 %v545
    %840 = vmatprep.subr.mxu0 %v544
    %841 = vmatpush2.msra.mxu0 %v543
    %842 = vmatprep.subr.mxu0 %v542
    %843 = vmatpush2.msra.mxu0 %v541
    %844 = vmatprep.subr.mxu0 %v540
    %845 = vmatpush2.msra.mxu0 %v539
    %846 = vmatprep.mubr.f32.mxu0 %v438
    %847 = vmatmul.mubr.f32.gmra.mxu0 %v437
    %v848 = vpop.f32.mrf.mxu0
    %v849 = vadd.f32 %v778, %v848
    %v850 = vpop.f32.mrf.mxu0
    %v851 = vadd.f32 %v780, %v850
    %852 = vdwg.mxu0
    %853 = vmatprep.subr.mxu0 %v602
    %854 = vmatpush1.msra.mxu0 %v601
    %855 = vmatprep.subr.mxu0 %v600
    %856 = vmatpush1.msra.mxu0 %v599
    %857 = vmatprep.subr.mxu0 %v598
    %858 = vmatpush1.msra.mxu0 %v597
    %859 = vmatprep.subr.mxu0 %v596
    %860 = vmatpush1.msra.mxu0 %v595
    %861 = vmatprep.subr.mxu0 %v594
    %862 = vmatpush1.msra.mxu0 %v593
    %863 = vmatprep.subr.mxu0 %v592
    %864 = vmatpush1.msra.mxu0 %v591
    %865 = vmatprep.subr.mxu0 %v590
    %866 = vmatpush1.msra.mxu0 %v589
    %867 = vmatprep.subr.mxu0 %v588
    %868 = vmatpush1.msra.mxu0 %v587
    %869 = vmatprep.subr.mxu0 %v586
    %870 = vmatpush1.msra.mxu0 %v585
    %871 = vmatprep.subr.mxu0 %v584
    %872 = vmatpush1.msra.mxu0 %v583
    %873 = vmatprep.subr.mxu0 %v582
    %874 = vmatpush1.msra.mxu0 %v581
    %875 = vmatprep.subr.mxu0 %v580
    %876 = vmatpush1.msra.mxu0 %v579
    %877 = vmatprep.subr.mxu0 %v578
    %878 = vmatpush1.msra.mxu0 %v577
    %879 = vmatprep.subr.mxu0 %v576
    %880 = vmatpush1.msra.mxu0 %v575
    %881 = vmatprep.subr.mxu0 %v574
    %882 = vmatpush1.msra.mxu0 %v573
    %883 = vmatprep.subr.mxu0 %v572
    %884 = vmatpush1.msra.mxu0 %v571
    %885 = vmatprep.subr.mxu0 %v634
    %886 = vmatpush2.msra.mxu0 %v633
    %887 = vmatprep.subr.mxu0 %v632
    %888 = vmatpush2.msra.mxu0 %v631
    %889 = vmatprep.subr.mxu0 %v630
    %890 = vmatpush2.msra.mxu0 %v629
    %891 = vmatprep.subr.mxu0 %v628
    %892 = vmatpush2.msra.mxu0 %v627
    %893 = vmatprep.subr.mxu0 %v626
    %894 = vmatpush2.msra.mxu0 %v625
    %895 = vmatprep.subr.mxu0 %v624
    %896 = vmatpush2.msra.mxu0 %v623
    %897 = vmatprep.subr.mxu0 %v622
    %898 = vmatpush2.msra.mxu0 %v621
    %899 = vmatprep.subr.mxu0 %v620
    %900 = vmatpush2.msra.mxu0 %v619
    %901 = vmatprep.subr.mxu0 %v618
    %902 = vmatpush2.msra.mxu0 %v617
    %903 = vmatprep.subr.mxu0 %v616
    %904 = vmatpush2.msra.mxu0 %v615
    %905 = vmatprep.subr.mxu0 %v614
    %906 = vmatpush2.msra.mxu0 %v613
    %907 = vmatprep.subr.mxu0 %v612
    %908 = vmatpush2.msra.mxu0 %v611
    %909 = vmatprep.subr.mxu0 %v610
    %910 = vmatpush2.msra.mxu0 %v609
    %911 = vmatprep.subr.mxu0 %v608
    %912 = vmatpush2.msra.mxu0 %v607
    %913 = vmatprep.subr.mxu0 %v606
    %914 = vmatpush2.msra.mxu0 %v605
    %915 = vmatprep.subr.mxu0 %v604
    %916 = vmatpush2.msra.mxu0 %v603
    %917 = vmatprep.mubr.f32.mxu0 %v440
    %918 = vmatmul.mubr.f32.gmra.mxu0 %v439
    %v919 = vpop.f32.mrf.mxu0
    %v920 = vadd.f32 %v849, %v919
    %v921 = vpop.f32.mrf.mxu0
    %v922 = vadd.f32 %v851, %v921
    %923 = vdwg.mxu0
    %924 = vmatprep.subr.mxu0 %v666
    %925 = vmatpush1.msra.mxu0 %v665
    %926 = vmatprep.subr.mxu0 %v664
    %927 = vmatpush1.msra.mxu0 %v663
    %928 = vmatprep.subr.mxu0 %v662
    %929 = vmatpush1.msra.mxu0 %v661
    %930 = vmatprep.subr.mxu0 %v660
    %931 = vmatpush1.msra.mxu0 %v659
    %932 = vmatprep.subr.mxu0 %v658
    %933 = vmatpush1.msra.mxu0 %v657
    %934 = vmatprep.subr.mxu0 %v656
    %935 = vmatpush1.msra.mxu0 %v655
    %936 = vmatprep.subr.mxu0 %v654
    %937 = vmatpush1.msra.mxu0 %v653
    %938 = vmatprep.subr.mxu0 %v652
    %939 = vmatpush1.msra.mxu0 %v651
    %940 = vmatprep.subr.mxu0 %v650
    %941 = vmatpush1.msra.mxu0 %v649
    %942 = vmatprep.subr.mxu0 %v648
    %943 = vmatpush1.msra.mxu0 %v647
    %944 = vmatprep.subr.mxu0 %v646
    %945 = vmatpush1.msra.mxu0 %v645
    %946 = vmatprep.subr.mxu0 %v644
    %947 = vmatpush1.msra.mxu0 %v643
    %948 = vmatprep.subr.mxu0 %v642
    %949 = vmatpush1.msra.mxu0 %v641
    %950 = vmatprep.subr.mxu0 %v640
    %951 = vmatpush1.msra.mxu0 %v639
    %952 = vmatprep.subr.mxu0 %v638
    %953 = vmatpush1.msra.mxu0 %v637
    %954 = vmatprep.subr.mxu0 %v636
    %955 = vmatpush1.msra.mxu0 %v635
    %956 = vmatprep.subr.mxu0 %v698
    %957 = vmatpush2.msra.mxu0 %v697
    %958 = vmatprep.subr.mxu0 %v696
    %959 = vmatpush2.msra.mxu0 %v695
    %960 = vmatprep.subr.mxu0 %v694
    %961 = vmatpush2.msra.mxu0 %v693
    %962 = vmatprep.subr.mxu0 %v692
    %963 = vmatpush2.msra.mxu0 %v691
    %964 = vmatprep.subr.mxu0 %v690
    %965 = vmatpush2.msra.mxu0 %v689
    %966 = vmatprep.subr.mxu0 %v688
    %967 = vmatpush2.msra.mxu0 %v687
    %968 = vmatprep.subr.mxu0 %v686
    %969 = vmatpush2.msra.mxu0 %v685
    %970 = vmatprep.subr.mxu0 %v684
    %971 = vmatpush2.msra.mxu0 %v683
    %972 = vmatprep.subr.mxu0 %v682
    %973 = vmatpush2.msra.mxu0 %v681
    %974 = vmatprep.subr.mxu0 %v680
    %975 = vmatpush2.msra.mxu0 %v679
    %976 = vmatprep.subr.mxu0 %v678
    %977 = vmatpush2.msra.mxu0 %v677
    %978 = vmatprep.subr.mxu0 %v676
    %979 = vmatpush2.msra.mxu0 %v675
    %980 = vmatprep.subr.mxu0 %v674
    %981 = vmatpush2.msra.mxu0 %v673
    %982 = vmatprep.subr.mxu0 %v672
    %983 = vmatpush2.msra.mxu0 %v671
    %984 = vmatprep.subr.mxu0 %v670
    %985 = vmatpush2.msra.mxu0 %v669
    %986 = vmatprep.subr.mxu0 %v668
    %987 = vmatpush2.msra.mxu0 %v667
    %988 = vmatprep.mubr.f32.mxu0 %v442
    %989 = vmatmul.mubr.f32.gmra.mxu0 %v441
    %v990 = vpop.f32.mrf.mxu0
    %v991 = vadd.f32 %v920, %v990
    %v992 = vpop.f32.mrf.mxu0
    %v993 = vadd.f32 %v922, %v992
    %994 = vdwg.mxu0
    %v995 = vmax.f32 %v991, 0.0
    %v996 = vmax.f32 %v993, 0.0
    %v997 = vld [vmem:[%s5] sm:$0xff]
    %v998 = vld [vmem:[%s5 + $0x8] sm:$0xff]
    %v999 = vld [vmem:[%s5 + $0x10] sm:$0xff]
    %v1000 = vld [vmem:[%s5 + $0x18] sm:$0xff]
    %v1001 = vld [vmem:[%s5 + $0x20] sm:$0xff]
    %v1002 = vld [vmem:[%s5 + $0x28] sm:$0xff]
    %v1003 = vld [vmem:[%s5 + $0x30] sm:$0xff]
    %v1004 = vld [vmem:[%s5 + $0x38] sm:$0xff]
    %v1005 = vld [vmem:[%s5 + $0x40] sm:$0xff]
    %v1006 = vld [vmem:[%s5 + $0x48] sm:$0xff]
    %v1007 = vld [vmem:[%s5 + $0x50] sm:$0xff]
    %v1008 = vld [vmem:[%s5 + $0x58] sm:$0xff]
    %v1009 = vld [vmem:[%s5 + $0x60] sm:$0xff]
    %v1010 = vld [vmem:[%s5 + $0x68] sm:$0xff]
    %v1011 = vld [vmem:[%s5 + $0x70] sm:$0xff]
    %v1012 = vld [vmem:[%s5 + $0x78] sm:$0xff]
    %v1013 = vld [vmem:[%s5 + $0x80] sm:$0xff]
    %v1014 = vld [vmem:[%s5 + $0x88] sm:$0xff]
    %v1015 = vld [vmem:[%s5 + $0x90] sm:$0xff]
    %v1016 = vld [vmem:[%s5 + $0x98] sm:$0xff]
    %v1017 = vld [vmem:[%s5 + $0xa0] sm:$0xff]
    %v1018 = vld [vmem:[%s5 + $0xa8] sm:$0xff]
    %v1019 = vld [vmem:[%s5 + $0xb0] sm:$0xff]
    %v1020 = vld [vmem:[%s5 + $0xb8] sm:$0xff]
    %v1021 = vld [vmem:[%s5 + $0xc0] sm:$0xff]
    %v1022 = vld [vmem:[%s5 + $0xc8] sm:$0xff]
    %v1023 = vld [vmem:[%s5 + $0xd0] sm:$0xff]
    %v1024 = vld [vmem:[%s5 + $0xd8] sm:$0xff]
    %v1025 = vld [vmem:[%s5 + $0xe0] sm:$0xff]
    %v1026 = vld [vmem:[%s5 + $0xe8] sm:$0xff]
    %v1027 = vld [vmem:[%s5 + $0xf0] sm:$0xff]
    %v1028 = vld [vmem:[%s5 + $0xf8] sm:$0xff]
    %v1029 = vld [vmem:[%s6] sm:$0x1]
    %v1031 = vlaneseq
    %v1032 = vshrl.u32 %v1031, 7
    %v1033 = vsub.s32 0, %v1032
    %v1034 = vrot.slane %v1029, %v1033
    %1036 = vmatprep.subr.mxu0 0.0
    %1037 = vmatpush1.msra.mxu0 %v1012
    %1038 = vmatprep.subr.mxu0 0.0
    %1039 = vmatpush1.msra.mxu0 %v1011
    %1040 = vmatprep.subr.mxu0 0.0
    %1041 = vmatpush1.msra.mxu0 %v1010
    %1042 = vmatprep.subr.mxu0 0.0
    %1043 = vmatpush1.msra.mxu0 %v1009
    %1044 = vmatprep.subr.mxu0 0.0
    %1045 = vmatpush1.msra.mxu0 %v1008
    %1046 = vmatprep.subr.mxu0 0.0
    %1047 = vmatpush1.msra.mxu0 %v1007
    %1048 = vmatprep.subr.mxu0 0.0
    %1049 = vmatpush1.msra.mxu0 %v1006
    %1050 = vmatprep.subr.mxu0 0.0
    %1051 = vmatpush1.msra.mxu0 %v1005
    %1052 = vmatprep.subr.mxu0 0.0
    %1053 = vmatpush1.msra.mxu0 %v1004
    %1054 = vmatprep.subr.mxu0 0.0
    %1055 = vmatpush1.msra.mxu0 %v1003
    %1056 = vmatprep.subr.mxu0 0.0
    %1057 = vmatpush1.msra.mxu0 %v1002
    %1058 = vmatprep.subr.mxu0 0.0
    %1059 = vmatpush1.msra.mxu0 %v1001
    %1060 = vmatprep.subr.mxu0 0.0
    %1061 = vmatpush1.msra.mxu0 %v1000
    %1062 = vmatprep.subr.mxu0 0.0
    %1063 = vmatpush1.msra.mxu0 %v999
    %1064 = vmatprep.subr.mxu0 0.0
    %1065 = vmatpush1.msra.mxu0 %v998
    %1066 = vmatprep.subr.mxu0 0.0
    %1067 = vmatpush1.msra.mxu0 %v997
    %1068 = vmatprep.subr.mxu0 0.0
    %1069 = vmatpush2.msra.mxu0 %v1028
    %1070 = vmatprep.subr.mxu0 0.0
    %1071 = vmatpush2.msra.mxu0 %v1027
    %1072 = vmatprep.subr.mxu0 0.0
    %1073 = vmatpush2.msra.mxu0 %v1026
    %1074 = vmatprep.subr.mxu0 0.0
    %1075 = vmatpush2.msra.mxu0 %v1025
    %1076 = vmatprep.subr.mxu0 0.0
    %1077 = vmatpush2.msra.mxu0 %v1024
    %1078 = vmatprep.subr.mxu0 0.0
    %1079 = vmatpush2.msra.mxu0 %v1023
    %1080 = vmatprep.subr.mxu0 0.0
    %1081 = vmatpush2.msra.mxu0 %v1022
    %1082 = vmatprep.subr.mxu0 0.0
    %1083 = vmatpush2.msra.mxu0 %v1021
    %1084 = vmatprep.subr.mxu0 0.0
    %1085 = vmatpush2.msra.mxu0 %v1020
    %1086 = vmatprep.subr.mxu0 0.0
    %1087 = vmatpush2.msra.mxu0 %v1019
    %1088 = vmatprep.subr.mxu0 0.0
    %1089 = vmatpush2.msra.mxu0 %v1018
    %1090 = vmatprep.subr.mxu0 0.0
    %1091 = vmatpush2.msra.mxu0 %v1017
    %1092 = vmatprep.subr.mxu0 0.0
    %1093 = vmatpush2.msra.mxu0 %v1016
    %1094 = vmatprep.subr.mxu0 0.0
    %1095 = vmatpush2.msra.mxu0 %v1015
    %1096 = vmatprep.subr.mxu0 0.0
    %1097 = vmatpush2.msra.mxu0 %v1014
    %1098 = vmatprep.subr.mxu0 0.0
    %1099 = vmatpush2.msra.mxu0 %v1013
    %1100 = vmatprep.mubr.f32.mxu0 %v996
    %1101 = vmatmul.mubr.f32.gmra.mxu0 %v995
    %v1102 = vpop.f32.mrf.mxu0
    %v1103 = vadd.f32 %v1034, %v1102
    %v1104 = vpop.f32.mrf.mxu0
    %1105 = vdwg.mxu0
    %v1106 = vxor.u32 %v1103, 2147483648
    %v1107 = vmul.f32 %v1106, 1.442695
    %v1108 = vpow.pop %v1107
    %v1109 = vadd.f32 %v1108, 1.0
    %v1110 = vrcp.pop %v1109
    %v1111 = vmul.f32 1.0, %v1110
    %1112 = vst [vmem:[%s7] sm:$0xff] %v1111
    // Predicated region
    $region34: #{my_model_forward.2} parent=1 // pred_check
      _
    $region35: #{my_model_forward.2} parent=1 // pred_check_branch
      %1114 = sbr.rel (0) target = $region37
    $region36: #{my_model_forward.2} parent=1 // pred_region
      _
    $region37: #{my_model_forward.2} parent=1 // pred_fallthru
      _
    // Predicated region
    $region38: #{my_model_forward.2} parent=1 // pred_check
      _
    $region39: #{my_model_forward.2} parent=1 // pred_check_branch
      %1116 = sbr.rel (0) target = $region41
    $region40: #{my_model_forward.2} parent=1 // pred_region
      _
    $region41: #{my_model_forward.2} parent=1 // pred_fallthru
      _
    %1117 = vsyncpa [#allocation3], 1

</llo_original>
